<compile_context>
chip_gen: v7x
topology: tpu7x:2x2x1
jax: 0.10.0
libtpu: 0.0.40
codegen_flags: <defaults>
</compile_context>

<pallas_src>
import functools

import jax
import jax.numpy as jnp
from jax.experimental import pallas as pl
from jax.experimental.pallas import tpu as pltpu


def _encoder_layer_kernel(H,
                          x_ref, mask_ref,
                          ln_g_ref, ln_b_ref,
                          wq_ref, bq_ref, wk_ref, bk_ref, wv_ref, bv_ref,
                          wo_ref, bo_ref,
                          w1_ref, b1_ref, w2_ref, b2_ref,
                          o_ref):
    L, E = x_ref.shape                       # one batch's (L, E) row slab per grid step
    hd = E // H
    eps = 1e-5
    bf16 = jnp.bfloat16
    f32 = jnp.float32

    ln_g = ln_g_ref[...]                     # (1, E) f32, shared between both LayerNorms
    ln_b = ln_b_ref[...]

    def layernorm(t):                        # f32 VPU/EUP math (v5e-friendly)
        m = jnp.mean(t, axis=-1, keepdims=True)
        c = t - m
        v = jnp.mean(c * c, axis=-1, keepdims=True)
        return c * jax.lax.rsqrt(v + eps) * ln_g + ln_b

    x = x_ref[...]                           # (L, E) f32
    residual = x

    # ---- Q/K/V projections (bf16 MXU operands, f32 accumulation) -------------------
    hb = layernorm(x).astype(bf16)
    # wq/bq are pre-scaled by 1/sqrt(hd) in the wrapper (scale folded into Q).
    q = jnp.dot(hb, wq_ref[...], preferred_element_type=f32) + bq_ref[...]
    k = jnp.dot(hb, wk_ref[...], preferred_element_type=f32) + bk_ref[...]
    v = jnp.dot(hb, wv_ref[...], preferred_element_type=f32) + bv_ref[...]

    # ---- head-major split on values only (no VMEM scratch, no masked scatter) ------
    def split_heads(t):                      # (L, E) f32 -> (H, L, hd) bf16
        return jnp.stack(
            [t[:, h * hd:(h + 1) * hd] for h in range(H)], axis=0).astype(bf16)

    qh = split_heads(q)
    kh = split_heads(k)
    vh = split_heads(v)

    # ---- attention: head-batched MXU contractions + EUP softmax --------------------
    s = jnp.einsum('hld,hmd->hlm', qh, kh,
                   preferred_element_type=f32)                     # (H, L, L)
    s = s + mask_ref[...][None, :, :]                              # additive mask
    s = s - jnp.max(s, axis=-1, keepdims=True)
    p = jnp.exp(s)                                                 # EUP
    denom = jnp.sum(p, axis=-1, keepdims=True)                     # (H, L, 1)
    ctx = jnp.einsum('hlm,hmd->hld', p.astype(bf16), vh,
                     preferred_element_type=f32)                   # (H, L, hd)
    # Normalise the small context, not the (H, L, L) probabilities (flash-style).
    ctx = ctx * pl.reciprocal(denom, approx=True)

    # ---- output projection: contract ctx directly against head-major wo ------------
    attn_h = jnp.einsum('hld,hde->hle', ctx.astype(bf16), wo_ref[...],
                        preferred_element_type=f32)                # (H, L, E)
    attn_out = jnp.sum(attn_h, axis=0) + bo_ref[...]               # (L, E)
    x1 = attn_out + residual                                       # dropout p=0.0

    # ---- FFN (shared LayerNorm params, per the module) ------------------------------
    h2 = layernorm(x1).astype(bf16)
    f = jnp.dot(h2, w1_ref[...], preferred_element_type=f32) + b1_ref[...]
    f = jnp.maximum(f, 0.0).astype(bf16)
    out = jnp.dot(f, w2_ref[...], preferred_element_type=f32) + b2_ref[...] + x1
    o_ref[...] = out                                               # lane-dense (E=128)


def transformer_encoder_layer(x, attn_mask, params, num_heads):
    """x: (L, N, E) float32, attn_mask: (L, L) float32 (nonzero => masked)."""
    L, N, E = x.shape
    FFN = params["w1"].shape[1]
    H = num_heads
    assert E % H == 0
    hd = E // H
    scale = 1.0 / float(hd) ** 0.5
    bf16 = jnp.bfloat16
    f32 = jnp.float32

    # Batch-major layout so each grid step owns one contiguous (L, E) row slab.
    x_nle = jnp.transpose(x, (1, 0, 2)).astype(f32)

    # Additive mask computed once: nonzero -> -1e8, zero entries keep their value (0).
    add_mask = jnp.where(attn_mask != 0, -1.0e8, attn_mask).astype(f32)

    # Fold the softmax scale into the Q projection (free, done once here).
    wq_s = (params["wq"] * scale).astype(bf16)
    bq_s = (params["bq"] * scale).astype(f32)
    # Head-major output projection so the kernel contracts ctx directly.
    wo_r = params["wo"].reshape(H, hd, E).astype(bf16)

    kernel = functools.partial(_encoder_layer_kernel, H)

    def const2(n):
        return (0, 0)

    def const3(n):
        return (0, 0, 0)

    out_nle = pl.pallas_call(
        kernel,
        out_shape=jax.ShapeDtypeStruct((N, L, E), f32),
        grid=(N,),
        in_specs=[
            pl.BlockSpec((None, L, E), lambda n: (n, 0, 0)),   # x: one batch per step
            pl.BlockSpec((L, L), const2),                      # additive mask
            pl.BlockSpec((1, E), const2),                      # ln_g
            pl.BlockSpec((1, E), const2),                      # ln_b
            pl.BlockSpec((E, E), const2),                      # wq (pre-scaled)
            pl.BlockSpec((1, E), const2),                      # bq (pre-scaled)
            pl.BlockSpec((E, E), const2),                      # wk
            pl.BlockSpec((1, E), const2),                      # bk
            pl.BlockSpec((E, E), const2),                      # wv
            pl.BlockSpec((1, E), const2),                      # bv
            pl.BlockSpec((H, hd, E), const3),                  # wo head-major
            pl.BlockSpec((1, E), const2),                      # bo
            pl.BlockSpec((E, FFN), const2),                    # w1
            pl.BlockSpec((1, FFN), const2),                    # b1
            pl.BlockSpec((FFN, E), const2),                    # w2
            pl.BlockSpec((1, E), const2),                      # b2
        ],
        out_specs=pl.BlockSpec((None, L, E), lambda n: (n, 0, 0)),
        compiler_params=pltpu.CompilerParams(
            dimension_semantics=("parallel",),                 # v7x: 2 TCs split batch
            vmem_limit_bytes=40 * 1024 * 1024),                # fits v7x 64 MiB physical
    )(
        x_nle, add_mask,
        params["ln_g"].astype(f32), params["ln_b"].astype(f32),
        wq_s, bq_s,
        params["wk"].astype(bf16), params["bk"].astype(f32),
        params["wv"].astype(bf16), params["bv"].astype(f32),
        wo_r, params["bo"].astype(f32),
        params["w1"].astype(bf16), params["b1"].astype(f32),
        params["w2"].astype(bf16), params["b2"].astype(f32),
    )
    return jnp.transpose(out_nle, (1, 0, 2))                   # back to (L, N, E)


def reference_forward(x, attn_mask, params, num_heads):
    """Pure-JAX f32 reference of the same forward pass (for verification)."""
    L, N, E = x.shape
    hd = E // num_heads
    eps = 1e-5
    g, b = params["ln_g"][0], params["ln_b"][0]

    def ln(t):
        m = jnp.mean(t, axis=-1, keepdims=True)
        v = jnp.mean((t - m) ** 2, axis=-1, keepdims=True)
        return (t - m) / jnp.sqrt(v + eps) * g + b

    mask = jnp.where(attn_mask != 0, -1.0e8, attn_mask)

    residual = x
    h = ln(x)
    q = h @ params["wq"] + params["bq"][0]
    k = h @ params["wk"] + params["bk"][0]
    v = h @ params["wv"] + params["bv"][0]

    def split(t):  # (L, N, E) -> (N, H, L, hd)
        return jnp.transpose(t.reshape(L, N, num_heads, hd), (1, 2, 0, 3))

    qh, kh, vh = split(q), split(k), split(v)
    s = jnp.einsum("nhld,nhmd->nhlm", qh, kh) / jnp.sqrt(hd) + mask
    p = jax.nn.softmax(s, axis=-1)
    ctx = jnp.einsum("nhlm,nhmd->nhld", p, vh)
    ctx = jnp.transpose(ctx, (2, 0, 1, 3)).reshape(L, N, E)
    attn_out = ctx @ params["wo"] + params["bo"][0]

    x1 = attn_out + residual
    residual2 = x1
    h2 = ln(x1)
    f = jax.nn.relu(h2 @ params["w1"] + params["b1"][0])
    return f @ params["w2"] + params["b2"][0] + residual2


if __name__ == "__main__":
    # Small, lane-dense test config: E = 128 (full lane width), FFN = 256, hd = 32.
    L, N, E, FFN, H = 16, 2, 128, 256, 4

    key = jax.random.PRNGKey(0)
    keys = jax.random.split(key, 16)

    def w(k, shape, scl=0.1):
        return (scl * jax.random.normal(k, shape)).astype(jnp.float32)

    params = {
        "ln_g": jnp.ones((1, E), jnp.float32),
        "ln_b": jnp.zeros((1, E), jnp.float32),
        "wq": w(keys[0], (E, E)), "bq": w(keys[1], (1, E)),
        "wk": w(keys[2], (E, E)), "bk": w(keys[3], (1, E)),
        "wv": w(keys[4], (E, E)), "bv": w(keys[5], (1, E)),
        "wo": w(keys[6], (E, E)), "bo": w(keys[7], (1, E)),
        "w1": w(keys[8], (E, FFN)), "b1": w(keys[9], (1, FFN)),
        "w2": w(keys[10], (FFN, E)), "b2": w(keys[11], (1, E)),
    }

    x = jax.random.normal(keys[12], (L, N, E), jnp.float32)
    # attn_mask: nonzero entries get masked (filled with -1e8), matching the module.
    attn_mask = (jax.random.uniform(keys[13], (L, L)) < 0.2).astype(jnp.float32)

    out = transformer_encoder_layer(x, attn_mask, params, H)
    out = jax.block_until_ready(out)

    ref = reference_forward(x, attn_mask, params, H)
    assert out.shape == (L, N, E)
    # Tolerance accounts for the deliberate bf16 MXU operands + approx reciprocal
    # in the kernel vs. the all-f32 reference.
    assert jnp.allclose(out, ref, atol=5e-2, rtol=5e-2), "mismatch vs JAX reference"

    print("KERNEL_OK")
</pallas_src>

<mosaic_0001>
module attributes {stable_mosaic.version = 11 : i64} {
  func.func @_encoder_layer_kernel(%arg0: i32, %arg1: memref<1x16x128xf32, #tpu.memory_space<vmem>>, %arg2: memref<16x16xf32, #tpu.memory_space<vmem>>, %arg3: memref<1x128xf32, #tpu.memory_space<vmem>>, %arg4: memref<1x128xf32, #tpu.memory_space<vmem>>, %arg5: memref<128x128xbf16, #tpu.memory_space<vmem>>, %arg6: memref<1x128xf32, #tpu.memory_space<vmem>>, %arg7: memref<128x128xbf16, #tpu.memory_space<vmem>>, %arg8: memref<1x128xf32, #tpu.memory_space<vmem>>, %arg9: memref<128x128xbf16, #tpu.memory_space<vmem>>, %arg10: memref<1x128xf32, #tpu.memory_space<vmem>>, %arg11: memref<4x32x128xbf16, #tpu.memory_space<vmem>>, %arg12: memref<1x128xf32, #tpu.memory_space<vmem>>, %arg13: memref<128x256xbf16, #tpu.memory_space<vmem>>, %arg14: memref<1x256xf32, #tpu.memory_space<vmem>>, %arg15: memref<256x128xbf16, #tpu.memory_space<vmem>>, %arg16: memref<1x128xf32, #tpu.memory_space<vmem>>, %arg17: memref<1x16x128xf32, #tpu.memory_space<vmem>>) attributes {dimension_semantics = [#tpu.dimension_semantics<parallel>], iteration_bounds = array<i64: 2>, scalar_prefetch = 0 : i64, scratch_operands = 0 : i64, tpu.core_type = #tpu.core_type<tc>, window_params = [{transform_indices = @transform_0, window_bounds = array<i64: 1, 16, 128>}, {pipeline_mode = #tpu.pipeline_mode<synchronous>, transform_indices = @transform_1, window_bounds = array<i64: 16, 16>}, {pipeline_mode = #tpu.pipeline_mode<synchronous>, transform_indices = @transform_2, window_bounds = array<i64: 1, 128>}, {pipeline_mode = #tpu.pipeline_mode<synchronous>, transform_indices = @transform_3, window_bounds = array<i64: 1, 128>}, {pipeline_mode = #tpu.pipeline_mode<synchronous>, transform_indices = @transform_4, window_bounds = array<i64: 128, 128>}, {pipeline_mode = #tpu.pipeline_mode<synchronous>, transform_indices = @transform_5, window_bounds = array<i64: 1, 128>}, {pipeline_mode = #tpu.pipeline_mode<synchronous>, transform_indices = @transform_6, window_bounds = array<i64: 128, 128>}, {pipeline_mode = #tpu.pipeline_mode<synchronous>, transform_indices = @transform_7, window_bounds = array<i64: 1, 128>}, {pipeline_mode = #tpu.pipeline_mode<synchronous>, transform_indices = @transform_8, window_bounds = array<i64: 128, 128>}, {pipeline_mode = #tpu.pipeline_mode<synchronous>, transform_indices = @transform_9, window_bounds = array<i64: 1, 128>}, {pipeline_mode = #tpu.pipeline_mode<synchronous>, transform_indices = @transform_10, window_bounds = array<i64: 4, 32, 128>}, {pipeline_mode = #tpu.pipeline_mode<synchronous>, transform_indices = @transform_11, window_bounds = array<i64: 1, 128>}, {pipeline_mode = #tpu.pipeline_mode<synchronous>, transform_indices = @transform_12, window_bounds = array<i64: 128, 256>}, {pipeline_mode = #tpu.pipeline_mode<synchronous>, transform_indices = @transform_13, window_bounds = array<i64: 1, 256>}, {pipeline_mode = #tpu.pipeline_mode<synchronous>, transform_indices = @transform_14, window_bounds = array<i64: 256, 128>}, {pipeline_mode = #tpu.pipeline_mode<synchronous>, transform_indices = @transform_15, window_bounds = array<i64: 1, 128>}, {transform_indices = @transform_16, window_bounds = array<i64: 1, 16, 128>}]} {
    %c0 = arith.constant 0 : index
    %c0_0 = arith.constant 0 : index
    %0 = vector.load %arg3[%c0, %c0_0] : memref<1x128xf32, #tpu.memory_space<vmem>>, vector<1x128xf32>
    %c0_1 = arith.constant 0 : index
    %c0_2 = arith.constant 0 : index
    %1 = vector.load %arg4[%c0_1, %c0_2] : memref<1x128xf32, #tpu.memory_space<vmem>>, vector<1x128xf32>
    %c0_3 = arith.constant 0 : index
    %c0_4 = arith.constant 0 : index
    %c0_5 = arith.constant 0 : index
    %2 = vector.load %arg1[%c0_3, %c0_4, %c0_5] : memref<1x16x128xf32, #tpu.memory_space<vmem>>, vector<1x16x128xf32>
    %3 = vector.shape_cast %2 : vector<1x16x128xf32> to vector<16x128xf32>
    %cst = arith.constant dense<0.000000e+00> : vector<16xf32>
    %4 = vector.multi_reduction <add>, %3, %cst [1] : vector<16x128xf32> to vector<16xf32>
    %5 = vector.shape_cast %4 : vector<16xf32> to vector<16x1xf32>
    %cst_6 = arith.constant 1.280000e+02 : f32
    %6 = vector.broadcast %cst_6 : f32 to vector<16x1xf32>
    %7 = arith.divf %5, %6 : vector<16x1xf32>
    %8 = vector.broadcast %7 : vector<16x1xf32> to vector<16x128xf32>
    %9 = arith.subf %3, %8 : vector<16x128xf32>
    %10 = arith.mulf %9, %9 : vector<16x128xf32>
    %cst_7 = arith.constant dense<0.000000e+00> : vector<16xf32>
    %11 = vector.multi_reduction <add>, %10, %cst_7 [1] : vector<16x128xf32> to vector<16xf32>
    %12 = vector.shape_cast %11 : vector<16xf32> to vector<16x1xf32>
    %cst_8 = arith.constant 1.280000e+02 : f32
    %13 = vector.broadcast %cst_8 : f32 to vector<16x1xf32>
    %14 = arith.divf %12, %13 : vector<16x1xf32>
    %cst_9 = arith.constant 9.99999974E-6 : f32
    %15 = vector.broadcast %cst_9 : f32 to vector<16x1xf32>
    %16 = arith.addf %14, %15 : vector<16x1xf32>
    %17 = math.rsqrt %16 : vector<16x1xf32>
    %18 = vector.broadcast %17 : vector<16x1xf32> to vector<16x128xf32>
    %19 = arith.mulf %9, %18 : vector<16x128xf32>
    %20 = vector.broadcast %0 : vector<1x128xf32> to vector<16x128xf32>
    %21 = arith.mulf %19, %20 : vector<16x128xf32>
    %22 = vector.broadcast %1 : vector<1x128xf32> to vector<16x128xf32>
    %23 = arith.addf %21, %22 : vector<16x128xf32>
    %24 = arith.truncf %23 : vector<16x128xf32> to vector<16x128xbf16>
    %c0_10 = arith.constant 0 : index
    %c0_11 = arith.constant 0 : index
    %25 = vector.load %arg5[%c0_10, %c0_11] : memref<128x128xbf16, #tpu.memory_space<vmem>>, vector<128x128xbf16>
    %cst_12 = arith.constant dense<0.000000e+00> : vector<16x128xf32>
    %26 = tpu.matmul %24, %25, %cst_12 {dimension_numbers = #tpu.dot_dimension_numbers<[1], [0], [0], [1], [0, 0, 1, 1], [], []>} : vector<16x128xbf16>, vector<128x128xbf16>, vector<16x128xf32> -> vector<16x128xf32>
    %c0_13 = arith.constant 0 : index
    %c0_14 = arith.constant 0 : index
    %27 = vector.load %arg6[%c0_13, %c0_14] : memref<1x128xf32, #tpu.memory_space<vmem>>, vector<1x128xf32>
    %28 = vector.broadcast %27 : vector<1x128xf32> to vector<16x128xf32>
    %29 = arith.addf %26, %28 : vector<16x128xf32>
    %c0_15 = arith.constant 0 : index
    %c0_16 = arith.constant 0 : index
    %30 = vector.load %arg7[%c0_15, %c0_16] : memref<128x128xbf16, #tpu.memory_space<vmem>>, vector<128x128xbf16>
    %cst_17 = arith.constant dense<0.000000e+00> : vector<16x128xf32>
    %31 = tpu.matmul %24, %30, %cst_17 {dimension_numbers = #tpu.dot_dimension_numbers<[1], [0], [0], [1], [0, 0, 1, 1], [], []>} : vector<16x128xbf16>, vector<128x128xbf16>, vector<16x128xf32> -> vector<16x128xf32>
    %c0_18 = arith.constant 0 : index
    %c0_19 = arith.constant 0 : index
    %32 = vector.load %arg8[%c0_18, %c0_19] : memref<1x128xf32, #tpu.memory_space<vmem>>, vector<1x128xf32>
    %33 = vector.broadcast %32 : vector<1x128xf32> to vector<16x128xf32>
    %34 = arith.addf %31, %33 : vector<16x128xf32>
    %c0_20 = arith.constant 0 : index
    %c0_21 = arith.constant 0 : index
    %35 = vector.load %arg9[%c0_20, %c0_21] : memref<128x128xbf16, #tpu.memory_space<vmem>>, vector<128x128xbf16>
    %cst_22 = arith.constant dense<0.000000e+00> : vector<16x128xf32>
    %36 = tpu.matmul %24, %35, %cst_22 {dimension_numbers = #tpu.dot_dimension_numbers<[1], [0], [0], [1], [0, 0, 1, 1], [], []>} : vector<16x128xbf16>, vector<128x128xbf16>, vector<16x128xf32> -> vector<16x128xf32>
    %c0_23 = arith.constant 0 : index
    %c0_24 = arith.constant 0 : index
    %37 = vector.load %arg10[%c0_23, %c0_24] : memref<1x128xf32, #tpu.memory_space<vmem>>, vector<1x128xf32>
    %38 = vector.broadcast %37 : vector<1x128xf32> to vector<16x128xf32>
    %39 = arith.addf %36, %38 : vector<16x128xf32>
    %40 = vector.extract_strided_slice %29 {offsets = [0, 0], sizes = [16, 32], strides = [1, 1]} : vector<16x128xf32> to vector<16x32xf32>
    %41 = vector.extract_strided_slice %29 {offsets = [0, 32], sizes = [16, 32], strides = [1, 1]} : vector<16x128xf32> to vector<16x32xf32>
    %42 = vector.extract_strided_slice %29 {offsets = [0, 64], sizes = [16, 32], strides = [1, 1]} : vector<16x128xf32> to vector<16x32xf32>
    %43 = vector.extract_strided_slice %29 {offsets = [0, 96], sizes = [16, 32], strides = [1, 1]} : vector<16x128xf32> to vector<16x32xf32>
    %44 = vector.shape_cast %40 : vector<16x32xf32> to vector<1x16x32xf32>
    %45 = vector.shape_cast %41 : vector<16x32xf32> to vector<1x16x32xf32>
    %46 = vector.shape_cast %42 : vector<16x32xf32> to vector<1x16x32xf32>
    %47 = vector.shape_cast %43 : vector<16x32xf32> to vector<1x16x32xf32>
    %48 = tpu.concatenate %44, %45, %46, %47 in 0 : vector<1x16x32xf32>, vector<1x16x32xf32>, vector<1x16x32xf32>, vector<1x16x32xf32> -> vector<4x16x32xf32>
    %49 = arith.truncf %48 : vector<4x16x32xf32> to vector<4x16x32xbf16>
    %50 = vector.extract_strided_slice %34 {offsets = [0, 0], sizes = [16, 32], strides = [1, 1]} : vector<16x128xf32> to vector<16x32xf32>
    %51 = vector.extract_strided_slice %34 {offsets = [0, 32], sizes = [16, 32], strides = [1, 1]} : vector<16x128xf32> to vector<16x32xf32>
    %52 = vector.extract_strided_slice %34 {offsets = [0, 64], sizes = [16, 32], strides = [1, 1]} : vector<16x128xf32> to vector<16x32xf32>
    %53 = vector.extract_strided_slice %34 {offsets = [0, 96], sizes = [16, 32], strides = [1, 1]} : vector<16x128xf32> to vector<16x32xf32>
    %54 = vector.shape_cast %50 : vector<16x32xf32> to vector<1x16x32xf32>
    %55 = vector.shape_cast %51 : vector<16x32xf32> to vector<1x16x32xf32>
    %56 = vector.shape_cast %52 : vector<16x32xf32> to vector<1x16x32xf32>
    %57 = vector.shape_cast %53 : vector<16x32xf32> to vector<1x16x32xf32>
    %58 = tpu.concatenate %54, %55, %56, %57 in 0 : vector<1x16x32xf32>, vector<1x16x32xf32>, vector<1x16x32xf32>, vector<1x16x32xf32> -> vector<4x16x32xf32>
    %59 = arith.truncf %58 : vector<4x16x32xf32> to vector<4x16x32xbf16>
    %60 = vector.extract_strided_slice %39 {offsets = [0, 0], sizes = [16, 32], strides = [1, 1]} : vector<16x128xf32> to vector<16x32xf32>
    %61 = vector.extract_strided_slice %39 {offsets = [0, 32], sizes = [16, 32], strides = [1, 1]} : vector<16x128xf32> to vector<16x32xf32>
    %62 = vector.extract_strided_slice %39 {offsets = [0, 64], sizes = [16, 32], strides = [1, 1]} : vector<16x128xf32> to vector<16x32xf32>
    %63 = vector.extract_strided_slice %39 {offsets = [0, 96], sizes = [16, 32], strides = [1, 1]} : vector<16x128xf32> to vector<16x32xf32>
    %64 = vector.shape_cast %60 : vector<16x32xf32> to vector<1x16x32xf32>
    %65 = vector.shape_cast %61 : vector<16x32xf32> to vector<1x16x32xf32>
    %66 = vector.shape_cast %62 : vector<16x32xf32> to vector<1x16x32xf32>
    %67 = vector.shape_cast %63 : vector<16x32xf32> to vector<1x16x32xf32>
    %68 = tpu.concatenate %64, %65, %66, %67 in 0 : vector<1x16x32xf32>, vector<1x16x32xf32>, vector<1x16x32xf32>, vector<1x16x32xf32> -> vector<4x16x32xf32>
    %69 = arith.truncf %68 : vector<4x16x32xf32> to vector<4x16x32xbf16>
    "tpu.trace_start"() <{level = 10 : i32, message = "hld,hmd->hlm"}> : () -> ()
    %cst_25 = arith.constant dense<0.000000e+00> : vector<4x16x16xf32>
    %70 = tpu.matmul %49, %59, %cst_25 {dimension_numbers = #tpu.dot_dimension_numbers<[2], [2], [1], [1], [0, 0, 0, 1, 1, 1], [0], [0]>} : vector<4x16x32xbf16>, vector<4x16x32xbf16>, vector<4x16x16xf32> -> vector<4x16x16xf32>
    "tpu.trace_stop"() : () -> ()
    %c0_26 = arith.constant 0 : index
    %c0_27 = arith.constant 0 : index
    %71 = vector.load %arg2[%c0_26, %c0_27] : memref<16x16xf32, #tpu.memory_space<vmem>>, vector<16x16xf32>
    %72 = vector.shape_cast %71 : vector<16x16xf32> to vector<1x16x16xf32>
    %73 = vector.broadcast %72 : vector<1x16x16xf32> to vector<4x16x16xf32>
    %74 = arith.addf %70, %73 : vector<4x16x16xf32>
    %cst_28 = arith.constant dense<0xFF800000> : vector<4x16xf32>
    %75 = vector.multi_reduction <maximumf>, %74, %cst_28 [2] : vector<4x16x16xf32> to vector<4x16xf32>
    %76 = vector.shape_cast %75 : vector<4x16xf32> to vector<4x16x1xf32>
    %77 = vector.broadcast %76 : vector<4x16x1xf32> to vector<4x16x16xf32>
    %78 = arith.subf %74, %77 : vector<4x16x16xf32>
    %79 = math.exp %78 : vector<4x16x16xf32>
    %cst_29 = arith.constant dense<0.000000e+00> : vector<4x16xf32>
    %80 = vector.multi_reduction <add>, %79, %cst_29 [2] : vector<4x16x16xf32> to vector<4x16xf32>
    %81 = vector.shape_cast %80 : vector<4x16xf32> to vector<4x16x1xf32>
    %82 = arith.truncf %79 : vector<4x16x16xf32> to vector<4x16x16xbf16>
    "tpu.trace_start"() <{level = 10 : i32, message = "hlm,hmd->hld"}> : () -> ()
    %cst_30 = arith.constant dense<0.000000e+00> : vector<4x16x32xf32>
    %83 = tpu.matmul %82, %69, %cst_30 {dimension_numbers = #tpu.dot_dimension_numbers<[2], [1], [1], [2], [0, 0, 0, 1, 1, 2], [0], [0]>} : vector<4x16x16xbf16>, vector<4x16x32xbf16>, vector<4x16x32xf32> -> vector<4x16x32xf32>
    "tpu.trace_stop"() : () -> ()
    %84 = tpu.reciprocal %81 {approx = true} : vector<4x16x1xf32> -> vector<4x16x1xf32>
    %85 = vector.broadcast %84 : vector<4x16x1xf32> to vector<4x16x32xf32>
    %86 = arith.mulf %83, %85 : vector<4x16x32xf32>
    %87 = arith.truncf %86 : vector<4x16x32xf32> to vector<4x16x32xbf16>
    %c0_31 = arith.constant 0 : index
    %c0_32 = arith.constant 0 : index
    %c0_33 = arith.constant 0 : index
    %88 = vector.load %arg11[%c0_31, %c0_32, %c0_33] : memref<4x32x128xbf16, #tpu.memory_space<vmem>>, vector<4x32x128xbf16>
    "tpu.trace_start"() <{level = 10 : i32, message = "hld,hde->hle"}> : () -> ()
    %cst_34 = arith.constant dense<0.000000e+00> : vector<4x16x128xf32>
    %89 = tpu.matmul %87, %88, %cst_34 {dimension_numbers = #tpu.dot_dimension_numbers<[2], [1], [1], [2], [0, 0, 0, 1, 1, 2], [0], [0]>} : vector<4x16x32xbf16>, vector<4x32x128xbf16>, vector<4x16x128xf32> -> vector<4x16x128xf32>
    "tpu.trace_stop"() : () -> ()
    %cst_35 = arith.constant dense<0.000000e+00> : vector<16x128xf32>
    %90 = vector.multi_reduction <add>, %89, %cst_35 [0] : vector<4x16x128xf32> to vector<16x128xf32>
    %c0_36 = arith.constant 0 : index
    %c0_37 = arith.constant 0 : index
    %91 = vector.load %arg12[%c0_36, %c0_37] : memref<1x128xf32, #tpu.memory_space<vmem>>, vector<1x128xf32>
    %92 = vector.broadcast %91 : vector<1x128xf32> to vector<16x128xf32>
    %93 = arith.addf %90, %92 : vector<16x128xf32>
    %94 = arith.addf %93, %3 : vector<16x128xf32>
    %cst_38 = arith.constant dense<0.000000e+00> : vector<16xf32>
    %95 = vector.multi_reduction <add>, %94, %cst_38 [1] : vector<16x128xf32> to vector<16xf32>
    %96 = vector.shape_cast %95 : vector<16xf32> to vector<16x1xf32>
    %cst_39 = arith.constant 1.280000e+02 : f32
    %97 = vector.broadcast %cst_39 : f32 to vector<16x1xf32>
    %98 = arith.divf %96, %97 : vector<16x1xf32>
    %99 = vector.broadcast %98 : vector<16x1xf32> to vector<16x128xf32>
    %100 = arith.subf %94, %99 : vector<16x128xf32>
    %101 = arith.mulf %100, %100 : vector<16x128xf32>
    %cst_40 = arith.constant dense<0.000000e+00> : vector<16xf32>
    %102 = vector.multi_reduction <add>, %101, %cst_40 [1] : vector<16x128xf32> to vector<16xf32>
    %103 = vector.shape_cast %102 : vector<16xf32> to vector<16x1xf32>
    %cst_41 = arith.constant 1.280000e+02 : f32
    %104 = vector.broadcast %cst_41 : f32 to vector<16x1xf32>
    %105 = arith.divf %103, %104 : vector<16x1xf32>
    %cst_42 = arith.constant 9.99999974E-6 : f32
    %106 = vector.broadcast %cst_42 : f32 to vector<16x1xf32>
    %107 = arith.addf %105, %106 : vector<16x1xf32>
    %108 = math.rsqrt %107 : vector<16x1xf32>
    %109 = vector.broadcast %108 : vector<16x1xf32> to vector<16x128xf32>
    %110 = arith.mulf %100, %109 : vector<16x128xf32>
    %111 = vector.broadcast %0 : vector<1x128xf32> to vector<16x128xf32>
    %112 = arith.mulf %110, %111 : vector<16x128xf32>
    %113 = vector.broadcast %1 : vector<1x128xf32> to vector<16x128xf32>
    %114 = arith.addf %112, %113 : vector<16x128xf32>
    %115 = arith.truncf %114 : vector<16x128xf32> to vector<16x128xbf16>
    %c0_43 = arith.constant 0 : index
    %c0_44 = arith.constant 0 : index
    %116 = vector.load %arg13[%c0_43, %c0_44] : memref<128x256xbf16, #tpu.memory_space<vmem>>, vector<128x256xbf16>
    %cst_45 = arith.constant dense<0.000000e+00> : vector<16x256xf32>
    %117 = tpu.matmul %115, %116, %cst_45 {dimension_numbers = #tpu.dot_dimension_numbers<[1], [0], [0], [1], [0, 0, 1, 1], [], []>} : vector<16x128xbf16>, vector<128x256xbf16>, vector<16x256xf32> -> vector<16x256xf32>
    %c0_46 = arith.constant 0 : index
    %c0_47 = arith.constant 0 : index
    %118 = vector.load %arg14[%c0_46, %c0_47] : memref<1x256xf32, #tpu.memory_space<vmem>>, vector<1x256xf32>
    %119 = vector.broadcast %118 : vector<1x256xf32> to vector<16x256xf32>
    %120 = arith.addf %117, %119 : vector<16x256xf32>
    %cst_48 = arith.constant 0.000000e+00 : f32
    %121 = vector.broadcast %cst_48 : f32 to vector<16x256xf32>
    %122 = arith.maximumf %120, %121 : vector<16x256xf32>
    %123 = arith.truncf %122 : vector<16x256xf32> to vector<16x256xbf16>
    %c0_49 = arith.constant 0 : index
    %c0_50 = arith.constant 0 : index
    %124 = vector.load %arg15[%c0_49, %c0_50] : memref<256x128xbf16, #tpu.memory_space<vmem>>, vector<256x128xbf16>
    %cst_51 = arith.constant dense<0.000000e+00> : vector<16x128xf32>
    %125 = tpu.matmul %123, %124, %cst_51 {dimension_numbers = #tpu.dot_dimension_numbers<[1], [0], [0], [1], [0, 0, 1, 1], [], []>} : vector<16x256xbf16>, vector<256x128xbf16>, vector<16x128xf32> -> vector<16x128xf32>
    %c0_52 = arith.constant 0 : index
    %c0_53 = arith.constant 0 : index
    %126 = vector.load %arg16[%c0_52, %c0_53] : memref<1x128xf32, #tpu.memory_space<vmem>>, vector<1x128xf32>
    %127 = vector.broadcast %126 : vector<1x128xf32> to vector<16x128xf32>
    %128 = arith.addf %125, %127 : vector<16x128xf32>
    %129 = arith.addf %128, %94 : vector<16x128xf32>
    %c0_54 = arith.constant 0 : index
    %c0_55 = arith.constant 0 : index
    %c0_56 = arith.constant 0 : index
    %130 = vector.load %arg17[%c0_54, %c0_55, %c0_56] : memref<1x16x128xf32, #tpu.memory_space<vmem>>, vector<1x16x128xf32>
    %131 = vector.shape_cast %130 : vector<1x16x128xf32> to vector<16x128xf32>
    %132 = vector.shape_cast %129 : vector<16x128xf32> to vector<1x16x128xf32>
    tpu.vector_store %arg17[%c0_54, %c0_55, %c0_56], %132 {strides = array<i32>} : memref<1x16x128xf32, #tpu.memory_space<vmem>>, vector<1x16x128xf32>,
    return
  }
  func.func @transform_0(%arg0: i32) -> (i32, i32, i32) {
    %c0_i32 = arith.constant 0 : i32
    %c0_i32_0 = arith.constant 0 : i32
    %c0_i32_1 = arith.constant 0 : i32
    return %arg0, %c0_i32, %c0_i32_0 : i32, i32, i32
  }
  func.func @transform_1(%arg0: i32) -> (i32, i32) {
    %c0_i32 = arith.constant 0 : i32
    %c0_i32_0 = arith.constant 0 : i32
    %c0_i32_1 = arith.constant 0 : i32
    return %c0_i32, %c0_i32_0 : i32, i32
  }
  func.func @transform_2(%arg0: i32) -> (i32, i32) {
    %c0_i32 = arith.constant 0 : i32
    %c0_i32_0 = arith.constant 0 : i32
    %c0_i32_1 = arith.constant 0 : i32
    return %c0_i32, %c0_i32_0 : i32, i32
  }
  func.func @transform_3(%arg0: i32) -> (i32, i32) {
    %c0_i32 = arith.constant 0 : i32
    %c0_i32_0 = arith.constant 0 : i32
    %c0_i32_1 = arith.constant 0 : i32
    return %c0_i32, %c0_i32_0 : i32, i32
  }
  func.func @transform_4(%arg0: i32) -> (i32, i32) {
    %c0_i32 = arith.constant 0 : i32
    %c0_i32_0 = arith.constant 0 : i32
    %c0_i32_1 = arith.constant 0 : i32
    return %c0_i32, %c0_i32_0 : i32, i32
  }
  func.func @transform_5(%arg0: i32) -> (i32, i32) {
    %c0_i32 = arith.constant 0 : i32
    %c0_i32_0 = arith.constant 0 : i32
    %c0_i32_1 = arith.constant 0 : i32
    return %c0_i32, %c0_i32_0 : i32, i32
  }
  func.func @transform_6(%arg0: i32) -> (i32, i32) {
    %c0_i32 = arith.constant 0 : i32
    %c0_i32_0 = arith.constant 0 : i32
    %c0_i32_1 = arith.constant 0 : i32
    return %c0_i32, %c0_i32_0 : i32, i32
  }
  func.func @transform_7(%arg0: i32) -> (i32, i32) {
    %c0_i32 = arith.constant 0 : i32
    %c0_i32_0 = arith.constant 0 : i32
    %c0_i32_1 = arith.constant 0 : i32
    return %c0_i32, %c0_i32_0 : i32, i32
  }
  func.func @transform_8(%arg0: i32) -> (i32, i32) {
    %c0_i32 = arith.constant 0 : i32
    %c0_i32_0 = arith.constant 0 : i32
    %c0_i32_1 = arith.constant 0 : i32
    return %c0_i32, %c0_i32_0 : i32, i32
  }
  func.func @transform_9(%arg0: i32) -> (i32, i32) {
    %c0_i32 = arith.constant 0 : i32
    %c0_i32_0 = arith.constant 0 : i32
    %c0_i32_1 = arith.constant 0 : i32
    return %c0_i32, %c0_i32_0 : i32, i32
  }
  func.func @transform_10(%arg0: i32) -> (i32, i32, i32) {
    %c0_i32 = arith.constant 0 : i32
    %c0_i32_0 = arith.constant 0 : i32
    %c0_i32_1 = arith.constant 0 : i32
    %c0_i32_2 = arith.constant 0 : i32
    return %c0_i32, %c0_i32_0, %c0_i32_1 : i32, i32, i32
  }
  func.func @transform_11(%arg0: i32) -> (i32, i32) {
    %c0_i32 = arith.constant 0 : i32
    %c0_i32_0 = arith.constant 0 : i32
    %c0_i32_1 = arith.constant 0 : i32
    return %c0_i32, %c0_i32_0 : i32, i32
  }
  func.func @transform_12(%arg0: i32) -> (i32, i32) {
    %c0_i32 = arith.constant 0 : i32
    %c0_i32_0 = arith.constant 0 : i32
    %c0_i32_1 = arith.constant 0 : i32
    return %c0_i32, %c0_i32_0 : i32, i32
  }
  func.func @transform_13(%arg0: i32) -> (i32, i32) {
    %c0_i32 = arith.constant 0 : i32
    %c0_i32_0 = arith.constant 0 : i32
    %c0_i32_1 = arith.constant 0 : i32
    return %c0_i32, %c0_i32_0 : i32, i32
  }
  func.func @transform_14(%arg0: i32) -> (i32, i32) {
    %c0_i32 = arith.constant 0 : i32
    %c0_i32_0 = arith.constant 0 : i32
    %c0_i32_1 = arith.constant 0 : i32
    return %c0_i32, %c0_i32_0 : i32, i32
  }
  func.func @transform_15(%arg0: i32) -> (i32, i32) {
    %c0_i32 = arith.constant 0 : i32
    %c0_i32_0 = arith.constant 0 : i32
    %c0_i32_1 = arith.constant 0 : i32
    return %c0_i32, %c0_i32_0 : i32, i32
  }
  func.func @transform_16(%arg0: i32) -> (i32, i32, i32) {
    %c0_i32 = arith.constant 0 : i32
    %c0_i32_0 = arith.constant 0 : i32
    %c0_i32_1 = arith.constant 0 : i32
    return %arg0, %c0_i32, %c0_i32_0 : i32, i32, i32
  }
}

</mosaic_0001>

<llo_original>
// kernel: tpu_custom_call.1
$region0: #{tpu_custom_call.1}
  #allocation0 [shape = 'u32[]', space=smem, size = 0x4, offset = 0x4, fixed_abs, tag = 'smem constant byte address 0x4 - core index']
  #allocation1 [shape = 'u32[144,128]{1,0:T(1,128)}', space=vmem, size = 0x12000, scoped, tag = 'internal scratch']
  %s0 = inlined_call_operand.hbm [shape: f32[2,16,128], index: 0, kind: input, shape index: {}]
  %s1 = inlined_call_operand.hbm [shape: f32[16,16], index: 1, kind: input, shape index: {}]
  %s2 = inlined_call_operand.vmem [shape: f32[1,128], index: 2, kind: input, shape index: {}]
  %s3 = inlined_call_operand.vmem [shape: f32[1,128], index: 3, kind: input, shape index: {}]
  %s4 = inlined_call_operand.hbm [shape: bf16[128,128], index: 4, kind: input, shape index: {}]
  %s5 = inlined_call_operand.vmem [shape: f32[1,128], index: 5, kind: input, shape index: {}]
  %s6 = inlined_call_operand.hbm [shape: bf16[128,128], index: 6, kind: input, shape index: {}]
  %s7 = inlined_call_operand.vmem [shape: f32[1,128], index: 7, kind: input, shape index: {}]
  %s8 = inlined_call_operand.hbm [shape: bf16[128,128], index: 8, kind: input, shape index: {}]
  %s9 = inlined_call_operand.vmem [shape: f32[1,128], index: 9, kind: input, shape index: {}]
  %s10 = inlined_call_operand.hbm [shape: bf16[4,32,128], index: 10, kind: input, shape index: {}]
  %s11 = inlined_call_operand.vmem [shape: f32[1,128], index: 11, kind: input, shape index: {}]
  %s12 = inlined_call_operand.hbm [shape: bf16[128,256], index: 12, kind: input, shape index: {}]
  %s13 = inlined_call_operand.vmem [shape: f32[1,256], index: 13, kind: input, shape index: {}]
  %s14 = inlined_call_operand.hbm [shape: bf16[256,128], index: 14, kind: input, shape index: {}]
  %s15 = inlined_call_operand.vmem [shape: f32[1,128], index: 15, kind: input, shape index: {}]
  %s16 = inlined_call_operand.hbm [shape: f32[2,16,128], index: 16, kind: output, shape index: {}]
  %s17 = sld [smem:[#allocation0]]
  $region129: #{tpu_custom_call.1} parent=0
    _
  %s19 = ssub.s32 1, %s17
  %s20 = scalar_select 0, %s19, %s17
  $region1: #{tpu_custom_call.1} parent=0
    #allocation2 [shape = 'u8[16384]{0}', space=vmem, size = 0x4000, scoped, tag = 'input window, operand 0']
    #allocation3 [shape = 's32[2]{0}', space=sflag, size = 0x8, scoped, tag = 'scoped memory for tpu_custom_call.1']
    #allocation4 [shape = 's32[2]{0}', space=sflag, size = 0x8, scoped, tag = 'scoped memory for tpu_custom_call.1']
    #allocation5 [shape = 'u8[8192]{0}', space=vmem, size = 0x2000, scoped, tag = 'input window, operand 1, single buffered']
    #allocation6 [shape = 's32[1]{0}', space=sflag, size = 0x4, scoped, tag = 'scoped memory for tpu_custom_call.1']
    #allocation7 [shape = 'u8[32768]{0}', space=vmem, size = 0x8000, scoped, tag = 'input window, operand 4, single buffered']
    #allocation8 [shape = 'u8[32768]{0}', space=vmem, size = 0x8000, scoped, tag = 'input window, operand 6, single buffered']
    #allocation9 [shape = 's32[1]{0}', space=sflag, size = 0x4, scoped, tag = 'scoped memory for tpu_custom_call.1']
    #allocation10 [shape = 'u8[32768]{0}', space=vmem, size = 0x8000, scoped, tag = 'input window, operand 8, single buffered']
    #allocation11 [shape = 'u8[32768]{0}', space=vmem, size = 0x8000, scoped, tag = 'input window, operand 10, single buffered']
    #allocation12 [shape = 's32[1]{0}', space=sflag, size = 0x4, scoped, tag = 'scoped memory for tpu_custom_call.1']
    #allocation13 [shape = 'u8[65536]{0}', space=vmem, size = 0x10000, scoped, tag = 'input window, operand 12, single buffered']
    #allocation14 [shape = 'u8[65536]{0}', space=vmem, size = 0x10000, scoped, tag = 'input window, operand 14, single buffered']
    #allocation15 [shape = 's32[1]{0}', space=sflag, size = 0x4, scoped, tag = 'scoped memory for tpu_custom_call.1']
    #allocation16 [shape = 'u8[16384]{0}', space=vmem, size = 0x4000, scoped, tag = 'output window, operand 0']
    %21 = vsyncpa [#allocation3], 0
    %s22 = scalar_lea.sflag [#allocation3], 1
    %23 = vsyncpa %s22, 0
    %24 = vsyncpa [#allocation6], 0
    %25 = vsyncpa [#allocation9], 0
    %26 = vsyncpa [#allocation12], 0
    %27 = vsyncpa [#allocation15], 0
    %28 = vsyncpa [#allocation4], 0
    %s29 = scalar_lea.sflag [#allocation4], 1
    %30 = vsyncpa %s29, 0
    loop: start=0, step=1, limit=4
    $region2: #{tpu_custom_call.1} parent=1 // loop_pre_header
      _
    $region3: #{tpu_custom_call.1} parent=1 // loop_header
      %s32 = sphi 0, %s36
      %p33 = scmp.ge.s32.totalorder %s32, 4
      %s42 = sphi 0, %s44
      %s45 = sphi 0, %s42
      %s46 = sphi 0, %s45
      %s62 = sphi 0, %s46
      %s66 = sphi 0, %s66
      %s68 = sphi 0, %s66
      %s69 = sphi 0, %s68
      %s83 = sphi 0, %s69
      %s87 = sphi 0, %s87
      %s89 = sphi 0, %s87
      %s90 = sphi 0, %s89
      %s104 = sphi 0, %s90
      %s108 = sphi 0, %s108
      %s110 = sphi 0, %s108
      %s111 = sphi 0, %s110
      %s125 = sphi 0, %s111
      %s129 = sphi 0, %s129
      %s131 = sphi 0, %s129
      %s132 = sphi 0, %s131
      %s146 = sphi 0, %s132
      %s150 = sphi 0, %s150
      %s152 = sphi 0, %s150
      %s153 = sphi 0, %s152
      %s167 = sphi 0, %s153
      %s171 = sphi 0, %s171
      %s173 = sphi 0, %s171
      %s174 = sphi 0, %s173
      %s188 = sphi 0, %s174
      %s192 = sphi 0, %s192
      %s194 = sphi 0, %s192
      %s195 = sphi 0, %s194
      %s209 = sphi 0, %s195
      %s213 = sphi 0, %s213
      %s215 = sphi 0, %s213
      %s216 = sphi 0, %s215
      %s230 = sphi 0, %s216
      %s234 = sphi 0, %s234
      %s236 = sphi 0, %s234
      %s237 = sphi 0, %s236
      %s251 = sphi 0, %s237
      %s255 = sphi 0, %s255
      %s257 = sphi 0, %s255
      %s258 = sphi 0, %s257
      %s272 = sphi 0, %s258
      %s276 = sphi 0, %s276
      %s278 = sphi 0, %s276
      %s279 = sphi 0, %s278
      %s293 = sphi 0, %s279
      %s297 = sphi 0, %s297
      %s299 = sphi 0, %s297
      %s300 = sphi 0, %s299
      %s314 = sphi 0, %s300
      %s318 = sphi 0, %s318
      %s320 = sphi 0, %s318
      %s321 = sphi 0, %s320
      %s335 = sphi 0, %s321
      %s339 = sphi 0, %s339
      %s341 = sphi 0, %s339
      %s342 = sphi 0, %s341
      %s356 = sphi 0, %s342
      %s360 = sphi 0, %s360
      %s362 = sphi 0, %s360
      %s363 = sphi 0, %s362
      %s377 = sphi 0, %s363
      %s383 = sphi 0, %s385
      %s386 = sphi 0, %s383
      %s387 = sphi 0, %s386
      %s403 = sphi 0, %s387
    $region4: #{tpu_custom_call.1} parent=1 // loop_header_branch
      %35 = sbr.rel (%p33) target = $region8
    $region5: #{tpu_custom_call.1} parent=1 // loop_body
      %s37 = ssub.s32 %s32, 1
      %s38 = ssub.s32 %s32, 2
      %s39 = sadd.s32 %s32, 1
      %s40 = ssub.s32 %s32, %s39
      %p41 = scmp.eq.s32.totalorder %s40, 0
      %s43 = sadd.s32 %s42, 1
      %s44 = scalar_select %p41, %s42, %s43
      %p47 = pneg %p41
      %p48 = scmp.eq.s32.totalorder %s32, 1
      %p49 = por %p47, %p48
      %p50 = scmp.ne.s32.totalorder %s42, %s45
      %p51 = scmp.eq.s32.totalorder %s32, 0
      %p52 = por %p50, %p51
      %p53 = scmp.ne.s32.totalorder %s42, %s45
      %p54 = scmp.eq.s32.totalorder %s37, 1
      %p55 = por %p53, %p54
      %p56 = scmp.ne.s32.totalorder %s45, %s46
      %p57 = scmp.eq.s32.totalorder %s37, 0
      %p58 = por %p56, %p57
      %p59 = scmp.ne.s32.totalorder %s45, %s46
      %p60 = scmp.eq.s32.totalorder %s38, 1
      %p61 = por %p59, %p60
      %p63 = scmp.ne.s32.totalorder %s46, %s62
      %p64 = scmp.eq.s32.totalorder %s38, 0
      %p65 = por %p63, %p64
      %s67 = sadd.s32 %s66, 1
      %p70 = scmp.eq.s32.totalorder %s32, 1
      %p71 = scmp.ne.s32.totalorder %s66, %s68
      %p72 = scmp.eq.s32.totalorder %s32, 0
      %p73 = por %p71, %p72
      %p74 = scmp.ne.s32.totalorder %s66, %s68
      %p75 = scmp.eq.s32.totalorder %s37, 1
      %p76 = por %p74, %p75
      %p77 = scmp.ne.s32.totalorder %s68, %s69
      %p78 = scmp.eq.s32.totalorder %s37, 0
      %p79 = por %p77, %p78
      %p80 = scmp.ne.s32.totalorder %s68, %s69
      %p81 = scmp.eq.s32.totalorder %s38, 1
      %p82 = por %p80, %p81
      %p84 = scmp.ne.s32.totalorder %s69, %s83
      %p85 = scmp.eq.s32.totalorder %s38, 0
      %p86 = por %p84, %p85
      %s88 = sadd.s32 %s87, 1
      %p91 = scmp.eq.s32.totalorder %s32, 1
      %p92 = scmp.ne.s32.totalorder %s87, %s89
      %p93 = scmp.eq.s32.totalorder %s32, 0
      %p94 = por %p92, %p93
      %p95 = scmp.ne.s32.totalorder %s87, %s89
      %p96 = scmp.eq.s32.totalorder %s37, 1
      %p97 = por %p95, %p96
      %p98 = scmp.ne.s32.totalorder %s89, %s90
      %p99 = scmp.eq.s32.totalorder %s37, 0
      %p100 = por %p98, %p99
      %p101 = scmp.ne.s32.totalorder %s89, %s90
      %p102 = scmp.eq.s32.totalorder %s38, 1
      %p103 = por %p101, %p102
      %p105 = scmp.ne.s32.totalorder %s90, %s104
      %p106 = scmp.eq.s32.totalorder %s38, 0
      %p107 = por %p105, %p106
      %s109 = sadd.s32 %s108, 1
      %p112 = scmp.eq.s32.totalorder %s32, 1
      %p113 = scmp.ne.s32.totalorder %s108, %s110
      %p114 = scmp.eq.s32.totalorder %s32, 0
      %p115 = por %p113, %p114
      %p116 = scmp.ne.s32.totalorder %s108, %s110
      %p117 = scmp.eq.s32.totalorder %s37, 1
      %p118 = por %p116, %p117
      %p119 = scmp.ne.s32.totalorder %s110, %s111
      %p120 = scmp.eq.s32.totalorder %s37, 0
      %p121 = por %p119, %p120
      %p122 = scmp.ne.s32.totalorder %s110, %s111
      %p123 = scmp.eq.s32.totalorder %s38, 1
      %p124 = por %p122, %p123
      %p126 = scmp.ne.s32.totalorder %s111, %s125
      %p127 = scmp.eq.s32.totalorder %s38, 0
      %p128 = por %p126, %p127
      %s130 = sadd.s32 %s129, 1
      %p133 = scmp.eq.s32.totalorder %s32, 1
      %p134 = scmp.ne.s32.totalorder %s129, %s131
      %p135 = scmp.eq.s32.totalorder %s32, 0
      %p136 = por %p134, %p135
      %p137 = scmp.ne.s32.totalorder %s129, %s131
      %p138 = scmp.eq.s32.totalorder %s37, 1
      %p139 = por %p137, %p138
      %p140 = scmp.ne.s32.totalorder %s131, %s132
      %p141 = scmp.eq.s32.totalorder %s37, 0
      %p142 = por %p140, %p141
      %p143 = scmp.ne.s32.totalorder %s131, %s132
      %p144 = scmp.eq.s32.totalorder %s38, 1
      %p145 = por %p143, %p144
      %p147 = scmp.ne.s32.totalorder %s132, %s146
      %p148 = scmp.eq.s32.totalorder %s38, 0
      %p149 = por %p147, %p148
      %s151 = sadd.s32 %s150, 1
      %p154 = scmp.eq.s32.totalorder %s32, 1
      %p155 = scmp.ne.s32.totalorder %s150, %s152
      %p156 = scmp.eq.s32.totalorder %s32, 0
      %p157 = por %p155, %p156
      %p158 = scmp.ne.s32.totalorder %s150, %s152
      %p159 = scmp.eq.s32.totalorder %s37, 1
      %p160 = por %p158, %p159
      %p161 = scmp.ne.s32.totalorder %s152, %s153
      %p162 = scmp.eq.s32.totalorder %s37, 0
      %p163 = por %p161, %p162
      %p164 = scmp.ne.s32.totalorder %s152, %s153
      %p165 = scmp.eq.s32.totalorder %s38, 1
      %p166 = por %p164, %p165
      %p168 = scmp.ne.s32.totalorder %s153, %s167
      %p169 = scmp.eq.s32.totalorder %s38, 0
      %p170 = por %p168, %p169
      %s172 = sadd.s32 %s171, 1
      %p175 = scmp.eq.s32.totalorder %s32, 1
      %p176 = scmp.ne.s32.totalorder %s171, %s173
      %p177 = scmp.eq.s32.totalorder %s32, 0
      %p178 = por %p176, %p177
      %p179 = scmp.ne.s32.totalorder %s171, %s173
      %p180 = scmp.eq.s32.totalorder %s37, 1
      %p181 = por %p179, %p180
      %p182 = scmp.ne.s32.totalorder %s173, %s174
      %p183 = scmp.eq.s32.totalorder %s37, 0
      %p184 = por %p182, %p183
      %p185 = scmp.ne.s32.totalorder %s173, %s174
      %p186 = scmp.eq.s32.totalorder %s38, 1
      %p187 = por %p185, %p186
      %p189 = scmp.ne.s32.totalorder %s174, %s188
      %p190 = scmp.eq.s32.totalorder %s38, 0
      %p191 = por %p189, %p190
      %s193 = sadd.s32 %s192, 1
      %p196 = scmp.eq.s32.totalorder %s32, 1
      %p197 = scmp.ne.s32.totalorder %s192, %s194
      %p198 = scmp.eq.s32.totalorder %s32, 0
      %p199 = por %p197, %p198
      %p200 = scmp.ne.s32.totalorder %s192, %s194
      %p201 = scmp.eq.s32.totalorder %s37, 1
      %p202 = por %p200, %p201
      %p203 = scmp.ne.s32.totalorder %s194, %s195
      %p204 = scmp.eq.s32.totalorder %s37, 0
      %p205 = por %p203, %p204
      %p206 = scmp.ne.s32.totalorder %s194, %s195
      %p207 = scmp.eq.s32.totalorder %s38, 1
      %p208 = por %p206, %p207
      %p210 = scmp.ne.s32.totalorder %s195, %s209
      %p211 = scmp.eq.s32.totalorder %s38, 0
      %p212 = por %p210, %p211
      %s214 = sadd.s32 %s213, 1
      %p217 = scmp.eq.s32.totalorder %s32, 1
      %p218 = scmp.ne.s32.totalorder %s213, %s215
      %p219 = scmp.eq.s32.totalorder %s32, 0
      %p220 = por %p218, %p219
      %p221 = scmp.ne.s32.totalorder %s213, %s215
      %p222 = scmp.eq.s32.totalorder %s37, 1
      %p223 = por %p221, %p222
      %p224 = scmp.ne.s32.totalorder %s215, %s216
      %p225 = scmp.eq.s32.totalorder %s37, 0
      %p226 = por %p224, %p225
      %p227 = scmp.ne.s32.totalorder %s215, %s216
      %p228 = scmp.eq.s32.totalorder %s38, 1
      %p229 = por %p227, %p228
      %p231 = scmp.ne.s32.totalorder %s216, %s230
      %p232 = scmp.eq.s32.totalorder %s38, 0
      %p233 = por %p231, %p232
      %s235 = sadd.s32 %s234, 1
      %p238 = scmp.eq.s32.totalorder %s32, 1
      %p239 = scmp.ne.s32.totalorder %s234, %s236
      %p240 = scmp.eq.s32.totalorder %s32, 0
      %p241 = por %p239, %p240
      %p242 = scmp.ne.s32.totalorder %s234, %s236
      %p243 = scmp.eq.s32.totalorder %s37, 1
      %p244 = por %p242, %p243
      %p245 = scmp.ne.s32.totalorder %s236, %s237
      %p246 = scmp.eq.s32.totalorder %s37, 0
      %p247 = por %p245, %p246
      %p248 = scmp.ne.s32.totalorder %s236, %s237
      %p249 = scmp.eq.s32.totalorder %s38, 1
      %p250 = por %p248, %p249
      %p252 = scmp.ne.s32.totalorder %s237, %s251
      %p253 = scmp.eq.s32.totalorder %s38, 0
      %p254 = por %p252, %p253
      %s256 = sadd.s32 %s255, 1
      %p259 = scmp.eq.s32.totalorder %s32, 1
      %p260 = scmp.ne.s32.totalorder %s255, %s257
      %p261 = scmp.eq.s32.totalorder %s32, 0
      %p262 = por %p260, %p261
      %p263 = scmp.ne.s32.totalorder %s255, %s257
      %p264 = scmp.eq.s32.totalorder %s37, 1
      %p265 = por %p263, %p264
      %p266 = scmp.ne.s32.totalorder %s257, %s258
      %p267 = scmp.eq.s32.totalorder %s37, 0
      %p268 = por %p266, %p267
      %p269 = scmp.ne.s32.totalorder %s257, %s258
      %p270 = scmp.eq.s32.totalorder %s38, 1
      %p271 = por %p269, %p270
      %p273 = scmp.ne.s32.totalorder %s258, %s272
      %p274 = scmp.eq.s32.totalorder %s38, 0
      %p275 = por %p273, %p274
      %s277 = sadd.s32 %s276, 1
      %p280 = scmp.eq.s32.totalorder %s32, 1
      %p281 = scmp.ne.s32.totalorder %s276, %s278
      %p282 = scmp.eq.s32.totalorder %s32, 0
      %p283 = por %p281, %p282
      %p284 = scmp.ne.s32.totalorder %s276, %s278
      %p285 = scmp.eq.s32.totalorder %s37, 1
      %p286 = por %p284, %p285
      %p287 = scmp.ne.s32.totalorder %s278, %s279
      %p288 = scmp.eq.s32.totalorder %s37, 0
      %p289 = por %p287, %p288
      %p290 = scmp.ne.s32.totalorder %s278, %s279
      %p291 = scmp.eq.s32.totalorder %s38, 1
      %p292 = por %p290, %p291
      %p294 = scmp.ne.s32.totalorder %s279, %s293
      %p295 = scmp.eq.s32.totalorder %s38, 0
      %p296 = por %p294, %p295
      %s298 = sadd.s32 %s297, 1
      %p301 = scmp.eq.s32.totalorder %s32, 1
      %p302 = scmp.ne.s32.totalorder %s297, %s299
      %p303 = scmp.eq.s32.totalorder %s32, 0
      %p304 = por %p302, %p303
      %p305 = scmp.ne.s32.totalorder %s297, %s299
      %p306 = scmp.eq.s32.totalorder %s37, 1
      %p307 = por %p305, %p306
      %p308 = scmp.ne.s32.totalorder %s299, %s300
      %p309 = scmp.eq.s32.totalorder %s37, 0
      %p310 = por %p308, %p309
      %p311 = scmp.ne.s32.totalorder %s299, %s300
      %p312 = scmp.eq.s32.totalorder %s38, 1
      %p313 = por %p311, %p312
      %p315 = scmp.ne.s32.totalorder %s300, %s314
      %p316 = scmp.eq.s32.totalorder %s38, 0
      %p317 = por %p315, %p316
      %s319 = sadd.s32 %s318, 1
      %p322 = scmp.eq.s32.totalorder %s32, 1
      %p323 = scmp.ne.s32.totalorder %s318, %s320
      %p324 = scmp.eq.s32.totalorder %s32, 0
      %p325 = por %p323, %p324
      %p326 = scmp.ne.s32.totalorder %s318, %s320
      %p327 = scmp.eq.s32.totalorder %s37, 1
      %p328 = por %p326, %p327
      %p329 = scmp.ne.s32.totalorder %s320, %s321
      %p330 = scmp.eq.s32.totalorder %s37, 0
      %p331 = por %p329, %p330
      %p332 = scmp.ne.s32.totalorder %s320, %s321
      %p333 = scmp.eq.s32.totalorder %s38, 1
      %p334 = por %p332, %p333
      %p336 = scmp.ne.s32.totalorder %s321, %s335
      %p337 = scmp.eq.s32.totalorder %s38, 0
      %p338 = por %p336, %p337
      %s340 = sadd.s32 %s339, 1
      %p343 = scmp.eq.s32.totalorder %s32, 1
      %p344 = scmp.ne.s32.totalorder %s339, %s341
      %p345 = scmp.eq.s32.totalorder %s32, 0
      %p346 = por %p344, %p345
      %p347 = scmp.ne.s32.totalorder %s339, %s341
      %p348 = scmp.eq.s32.totalorder %s37, 1
      %p349 = por %p347, %p348
      %p350 = scmp.ne.s32.totalorder %s341, %s342
      %p351 = scmp.eq.s32.totalorder %s37, 0
      %p352 = por %p350, %p351
      %p353 = scmp.ne.s32.totalorder %s341, %s342
      %p354 = scmp.eq.s32.totalorder %s38, 1
      %p355 = por %p353, %p354
      %p357 = scmp.ne.s32.totalorder %s342, %s356
      %p358 = scmp.eq.s32.totalorder %s38, 0
      %p359 = por %p357, %p358
      %s361 = sadd.s32 %s360, 1
      %p364 = scmp.eq.s32.totalorder %s32, 1
      %p365 = scmp.ne.s32.totalorder %s360, %s362
      %p366 = scmp.eq.s32.totalorder %s32, 0
      %p367 = por %p365, %p366
      %p368 = scmp.ne.s32.totalorder %s360, %s362
      %p369 = scmp.eq.s32.totalorder %s37, 1
      %p370 = por %p368, %p369
      %p371 = scmp.ne.s32.totalorder %s362, %s363
      %p372 = scmp.eq.s32.totalorder %s37, 0
      %p373 = por %p371, %p372
      %p374 = scmp.ne.s32.totalorder %s362, %s363
      %p375 = scmp.eq.s32.totalorder %s38, 1
      %p376 = por %p374, %p375
      %p378 = scmp.ne.s32.totalorder %s363, %s377
      %p379 = scmp.eq.s32.totalorder %s38, 0
      %p380 = por %p378, %p379
      %s381 = ssub.s32 %s32, %s39
      %p382 = scmp.eq.s32.totalorder %s381, 0
      %s384 = sadd.s32 %s383, 1
      %s385 = scalar_select %p382, %s383, %s384
      %p388 = pneg %p382
      %p389 = scmp.eq.s32.totalorder %s32, 1
      %p390 = por %p388, %p389
      %p391 = scmp.ne.s32.totalorder %s383, %s386
      %p392 = scmp.eq.s32.totalorder %s32, 0
      %p393 = por %p391, %p392
      %p394 = scmp.ne.s32.totalorder %s383, %s386
      %p395 = scmp.eq.s32.totalorder %s37, 1
      %p396 = por %p394, %p395
      %p397 = scmp.ne.s32.totalorder %s386, %s387
      %p398 = scmp.eq.s32.totalorder %s37, 0
      %p399 = por %p397, %p398
      %p400 = scmp.ne.s32.totalorder %s386, %s387
      %p401 = scmp.eq.s32.totalorder %s38, 1
      %p402 = por %p400, %p401
      %p404 = scmp.ne.s32.totalorder %s387, %s403
      %p405 = scmp.eq.s32.totalorder %s38, 0
      %p406 = por %p404, %p405
      %p407 = scmp.le.s32.totalorder 1, %s32
      %p408 = scmp.lt.s32.totalorder %s32, 3
      %p409 = pnand %p407, %p408
      %p410 = pneg %p409
      // Predicated region
      $region9: #{tpu_custom_call.1} parent=5 // pred_check
        _
      $region10: #{tpu_custom_call.1} parent=5 // pred_check_branch
        %412 = sbr.rel (%p409) target = $region12
      $region11: #{tpu_custom_call.1} parent=5 // pred_region
        %s413 = ssub.s32 %s32, 1
        // Predicated region
        $region13: #{tpu_custom_call.1} parent=11 // pred_check
          %p414 = pneg %p79
        $region14: #{tpu_custom_call.1} parent=11 // pred_check_branch
          %416 = sbr.rel (%p414) target = $region16
        $region15: #{tpu_custom_call.1} parent=11 // pred_region
          %s418 = ssub.s32 256, 256
          %419 = vsyncadd [#allocation6], %s418
          %s420 = sshll.u32 [#allocation5], 4
          %s421 = int_to_ptr.vmem [resolvable:$true] %s420
          %426 = dma.hbm_to_vmem [thread:$0]  %s1, 256, %s421, [#allocation6], 128, 128, 8
        $region16: #{tpu_custom_call.1} parent=11 // pred_fallthru
          _
        // Predicated region
        $region17: #{tpu_custom_call.1} parent=11 // pred_check
          %p427 = pneg %p100
        $region18: #{tpu_custom_call.1} parent=11 // pred_check_branch
          %429 = sbr.rel (%p427) target = $region20
        $region19: #{tpu_custom_call.1} parent=11 // pred_region
          _
        $region20: #{tpu_custom_call.1} parent=11 // pred_fallthru
          _
        // Predicated region
        $region21: #{tpu_custom_call.1} parent=11 // pred_check
          %p430 = pneg %p121
        $region22: #{tpu_custom_call.1} parent=11 // pred_check_branch
          %432 = sbr.rel (%p430) target = $region24
        $region23: #{tpu_custom_call.1} parent=11 // pred_region
          _
        $region24: #{tpu_custom_call.1} parent=11 // pred_fallthru
          _
        // Predicated region
        $region25: #{tpu_custom_call.1} parent=11 // pred_check
          %p433 = pneg %p142
        $region26: #{tpu_custom_call.1} parent=11 // pred_check_branch
          %435 = sbr.rel (%p433) target = $region28
        $region27: #{tpu_custom_call.1} parent=11 // pred_region
          %s437 = ssub.s32 1024, 1024
          %438 = vsyncadd [#allocation6], %s437
          %s439 = sshll.u32 [#allocation7], 4
          %s440 = int_to_ptr.vmem [resolvable:$true] %s439
          %445 = dma.hbm_to_vmem [thread:$0]  %s4, 1024, %s440, [#allocation6], 64, 64, 4
        $region28: #{tpu_custom_call.1} parent=11 // pred_fallthru
          _
        // Predicated region
        $region29: #{tpu_custom_call.1} parent=11 // pred_check
          %p446 = pneg %p163
        $region30: #{tpu_custom_call.1} parent=11 // pred_check_branch
          %448 = sbr.rel (%p446) target = $region32
        $region31: #{tpu_custom_call.1} parent=11 // pred_region
          _
        $region32: #{tpu_custom_call.1} parent=11 // pred_fallthru
          _
        // Predicated region
        $region33: #{tpu_custom_call.1} parent=11 // pred_check
          %p449 = pneg %p184
        $region34: #{tpu_custom_call.1} parent=11 // pred_check_branch
          %451 = sbr.rel (%p449) target = $region36
        $region35: #{tpu_custom_call.1} parent=11 // pred_region
          %s453 = ssub.s32 1024, 1024
          %454 = vsyncadd [#allocation9], %s453
          %s455 = sshll.u32 [#allocation8], 4
          %s456 = int_to_ptr.vmem [resolvable:$true] %s455
          %461 = dma.hbm_to_vmem [thread:$0]  %s6, 1024, %s456, [#allocation9], 64, 64, 4
        $region36: #{tpu_custom_call.1} parent=11 // pred_fallthru
          _
        // Predicated region
        $region37: #{tpu_custom_call.1} parent=11 // pred_check
          %p462 = pneg %p205
        $region38: #{tpu_custom_call.1} parent=11 // pred_check_branch
          %464 = sbr.rel (%p462) target = $region40
        $region39: #{tpu_custom_call.1} parent=11 // pred_region
          _
        $region40: #{tpu_custom_call.1} parent=11 // pred_fallthru
          _
        // Predicated region
        $region41: #{tpu_custom_call.1} parent=11 // pred_check
          %p465 = pneg %p226
        $region42: #{tpu_custom_call.1} parent=11 // pred_check_branch
          %467 = sbr.rel (%p465) target = $region44
        $region43: #{tpu_custom_call.1} parent=11 // pred_region
          %s469 = ssub.s32 1024, 1024
          %470 = vsyncadd [#allocation9], %s469
          %s471 = sshll.u32 [#allocation10], 4
          %s472 = int_to_ptr.vmem [resolvable:$true] %s471
          %477 = dma.hbm_to_vmem [thread:$0]  %s8, 1024, %s472, [#allocation9], 64, 64, 4
        $region44: #{tpu_custom_call.1} parent=11 // pred_fallthru
          _
        // Predicated region
        $region45: #{tpu_custom_call.1} parent=11 // pred_check
          %p478 = pneg %p247
        $region46: #{tpu_custom_call.1} parent=11 // pred_check_branch
          %480 = sbr.rel (%p478) target = $region48
        $region47: #{tpu_custom_call.1} parent=11 // pred_region
          _
        $region48: #{tpu_custom_call.1} parent=11 // pred_fallthru
          _
        // Predicated region
        $region49: #{tpu_custom_call.1} parent=11 // pred_check
          %p481 = pneg %p268
        $region50: #{tpu_custom_call.1} parent=11 // pred_check_branch
          %483 = sbr.rel (%p481) target = $region52
        $region51: #{tpu_custom_call.1} parent=11 // pred_region
          %s485 = ssub.s32 1024, 1024
          %486 = vsyncadd [#allocation12], %s485
          %s487 = sshll.u32 [#allocation11], 4
          %s488 = int_to_ptr.vmem [resolvable:$true] %s487
          %493 = dma.hbm_to_vmem [thread:$0]  %s10, 1024, %s488, [#allocation12], 64, 64, 4
        $region52: #{tpu_custom_call.1} parent=11 // pred_fallthru
          _
        // Predicated region
        $region53: #{tpu_custom_call.1} parent=11 // pred_check
          %p494 = pneg %p289
        $region54: #{tpu_custom_call.1} parent=11 // pred_check_branch
          %496 = sbr.rel (%p494) target = $region56
        $region55: #{tpu_custom_call.1} parent=11 // pred_region
          _
        $region56: #{tpu_custom_call.1} parent=11 // pred_fallthru
          _
        // Predicated region
        $region57: #{tpu_custom_call.1} parent=11 // pred_check
          %p497 = pneg %p310
        $region58: #{tpu_custom_call.1} parent=11 // pred_check_branch
          %499 = sbr.rel (%p497) target = $region60
        $region59: #{tpu_custom_call.1} parent=11 // pred_region
          %s501 = ssub.s32 2048, 2048
          %502 = vsyncadd [#allocation12], %s501
          %s503 = sshll.u32 [#allocation13], 4
          %s504 = int_to_ptr.vmem [resolvable:$true] %s503
          %509 = dma.hbm_to_vmem [thread:$0]  %s12, 2048, %s504, [#allocation12], 128, 128, 8
        $region60: #{tpu_custom_call.1} parent=11 // pred_fallthru
          _
        // Predicated region
        $region61: #{tpu_custom_call.1} parent=11 // pred_check
          %p510 = pneg %p331
        $region62: #{tpu_custom_call.1} parent=11 // pred_check_branch
          %512 = sbr.rel (%p510) target = $region64
        $region63: #{tpu_custom_call.1} parent=11 // pred_region
          _
        $region64: #{tpu_custom_call.1} parent=11 // pred_fallthru
          _
        // Predicated region
        $region65: #{tpu_custom_call.1} parent=11 // pred_check
          %p513 = pneg %p352
        $region66: #{tpu_custom_call.1} parent=11 // pred_check_branch
          %515 = sbr.rel (%p513) target = $region68
        $region67: #{tpu_custom_call.1} parent=11 // pred_region
          %s517 = ssub.s32 2048, 2048
          %518 = vsyncadd [#allocation15], %s517
          %s519 = sshll.u32 [#allocation14], 4
          %s520 = int_to_ptr.vmem [resolvable:$true] %s519
          %525 = dma.hbm_to_vmem [thread:$0]  %s14, 2048, %s520, [#allocation15], 64, 64, 4
        $region68: #{tpu_custom_call.1} parent=11 // pred_fallthru
          _
        // Predicated region
        $region69: #{tpu_custom_call.1} parent=11 // pred_check
          %p526 = pneg %p373
        $region70: #{tpu_custom_call.1} parent=11 // pred_check_branch
          %528 = sbr.rel (%p526) target = $region72
        $region71: #{tpu_custom_call.1} parent=11 // pred_region
          _
        $region72: #{tpu_custom_call.1} parent=11 // pred_fallthru
          _
      $region12: #{tpu_custom_call.1} parent=5 // pred_fallthru
        _
      %p529 = scmp.lt.s32.totalorder %s32, 2
      // Predicated region
      $region73: #{tpu_custom_call.1} parent=5 // pred_check
        %p530 = pneg %p529
      $region74: #{tpu_custom_call.1} parent=5 // pred_check_branch
        %532 = sbr.rel (%p530) target = $region76
      $region75: #{tpu_custom_call.1} parent=5 // pred_region
        // Predicated region
        $region77: #{tpu_custom_call.1} parent=75 // pred_check
          %p533 = pneg %p52
        $region78: #{tpu_custom_call.1} parent=75 // pred_check_branch
          %535 = sbr.rel (%p533) target = $region80
        $region79: #{tpu_custom_call.1} parent=75 // pred_region
          %s536 = sand.u32 %s42, 1
          %s537 = scalar_lea.sflag [#allocation3], %s536
          %s538 = sand.u32 %s42, 1
          %s539 = smul.addr %s538, 16
          %s540 = scalar_lea.vmem [#allocation2], %s539
          %s542 = ssub.s32 256, 256
          %543 = vsyncadd %s537, %s542
          %s544 = smul.addr %s32, 2
          %s545 = smul.addr %s544, 128
          %s546 = scalar_lea.hbm %s0, %s545
          %s547 = sshll.u32 %s540, 4
          %s548 = int_to_ptr.vmem [resolvable:$true] %s547
          %553 = dma.hbm_to_vmem [thread:$0]  %s546, 256, %s548, %s537, 128, 128, 8
        $region80: #{tpu_custom_call.1} parent=75 // pred_fallthru
          _
      $region76: #{tpu_custom_call.1} parent=5 // pred_fallthru
        _
      %p554 = scmp.le.s32.totalorder 1, %s32
      %p555 = scmp.lt.s32.totalorder %s32, 3
      %p556 = pnand %p554, %p555
      %p557 = pneg %p556
      // Predicated region
      $region81: #{tpu_custom_call.1} parent=5 // pred_check
        _
      $region82: #{tpu_custom_call.1} parent=5 // pred_check_branch
        %559 = sbr.rel (%p556) target = $region84
      $region83: #{tpu_custom_call.1} parent=5 // pred_region
        %s560 = ssub.s32 %s32, 1
        %s561 = sand.u32 %s45, 1
        %s562 = scalar_lea.sflag [#allocation3], %s561
        %s563 = sand.u32 %s45, 1
        %s564 = smul.addr %s563, 16
        %s565 = scalar_lea.vmem [#allocation2], %s564
        // Predicated region
        $region85: #{tpu_custom_call.1} parent=83 // pred_check
          %p566 = pneg %p58
        $region86: #{tpu_custom_call.1} parent=83 // pred_check_branch
          %568 = sbr.rel (%p566) target = $region88
        $region87: #{tpu_custom_call.1} parent=83 // pred_region
          %569 = dma.done %s562, 256
        $region88: #{tpu_custom_call.1} parent=83 // pred_fallthru
          _
        // Predicated region
        $region89: #{tpu_custom_call.1} parent=83 // pred_check
          %p570 = pneg %p79
        $region90: #{tpu_custom_call.1} parent=83 // pred_check_branch
          %572 = sbr.rel (%p570) target = $region92
        $region91: #{tpu_custom_call.1} parent=83 // pred_region
          %573 = dma.done [#allocation6], 256
        $region92: #{tpu_custom_call.1} parent=83 // pred_fallthru
          _
        // Predicated region
        $region93: #{tpu_custom_call.1} parent=83 // pred_check
          %p574 = pneg %p142
        $region94: #{tpu_custom_call.1} parent=83 // pred_check_branch
          %576 = sbr.rel (%p574) target = $region96
        $region95: #{tpu_custom_call.1} parent=83 // pred_region
          %577 = dma.done [#allocation6], 1024
        $region96: #{tpu_custom_call.1} parent=83 // pred_fallthru
          _
        // Predicated region
        $region97: #{tpu_custom_call.1} parent=83 // pred_check
          %p578 = pneg %p184
        $region98: #{tpu_custom_call.1} parent=83 // pred_check_branch
          %580 = sbr.rel (%p578) target = $region100
        $region99: #{tpu_custom_call.1} parent=83 // pred_region
          %581 = dma.done [#allocation9], 1024
        $region100: #{tpu_custom_call.1} parent=83 // pred_fallthru
          _
        // Predicated region
        $region101: #{tpu_custom_call.1} parent=83 // pred_check
          %p582 = pneg %p226
        $region102: #{tpu_custom_call.1} parent=83 // pred_check_branch
          %584 = sbr.rel (%p582) target = $region104
        $region103: #{tpu_custom_call.1} parent=83 // pred_region
          %585 = dma.done [#allocation9], 1024
        $region104: #{tpu_custom_call.1} parent=83 // pred_fallthru
          _
        // Predicated region
        $region105: #{tpu_custom_call.1} parent=83 // pred_check
          %p586 = pneg %p268
        $region106: #{tpu_custom_call.1} parent=83 // pred_check_branch
          %588 = sbr.rel (%p586) target = $region108
        $region107: #{tpu_custom_call.1} parent=83 // pred_region
          %589 = dma.done [#allocation12], 1024
        $region108: #{tpu_custom_call.1} parent=83 // pred_fallthru
          _
        // Predicated region
        $region109: #{tpu_custom_call.1} parent=83 // pred_check
          %p590 = pneg %p310
        $region110: #{tpu_custom_call.1} parent=83 // pred_check_branch
          %592 = sbr.rel (%p590) target = $region112
        $region111: #{tpu_custom_call.1} parent=83 // pred_region
          %593 = dma.done [#allocation12], 2048
        $region112: #{tpu_custom_call.1} parent=83 // pred_fallthru
          _
        // Predicated region
        $region113: #{tpu_custom_call.1} parent=83 // pred_check
          %p594 = pneg %p352
        $region114: #{tpu_custom_call.1} parent=83 // pred_check_branch
          %596 = sbr.rel (%p594) target = $region116
        $region115: #{tpu_custom_call.1} parent=83 // pred_region
          %597 = dma.done [#allocation15], 2048
        $region116: #{tpu_custom_call.1} parent=83 // pred_fallthru
          _
        %s598 = sand.u32 %s45, 1
        %s599 = scalar_lea.sflag [#allocation3], %s598
        %s600 = sand.u32 %s45, 1
        %s601 = smul.addr %s600, 16
        %s602 = scalar_lea.vmem [#allocation2], %s601
        %p603 = pneg %p58
        %p604 = pneg %p55
        %p605 = pneg %p79
        %p606 = pneg %p76
        %p607 = pneg %p100
        %p608 = pneg %p97
        %p609 = pneg %p121
        %p610 = pneg %p118
        %p611 = pneg %p142
        %p612 = pneg %p139
        %p613 = pneg %p163
        %p614 = pneg %p160
        %p615 = pneg %p184
        %p616 = pneg %p181
        %p617 = pneg %p205
        %p618 = pneg %p202
        %p619 = pneg %p226
        %p620 = pneg %p223
        %p621 = pneg %p247
        %p622 = pneg %p244
        %p623 = pneg %p268
        %p624 = pneg %p265
        %p625 = pneg %p289
        %p626 = pneg %p286
        %p627 = pneg %p310
        %p628 = pneg %p307
        %p629 = pneg %p331
        %p630 = pneg %p328
        %p631 = pneg %p352
        %p632 = pneg %p349
        %p633 = pneg %p373
        %p634 = pneg %p370
        %p635 = pneg %p399
        %p636 = pneg %p396
        %s637 = sand.u32 %s386, 1
        %s638 = scalar_lea.sflag [#allocation4], %s637
        %s639 = sand.u32 %s386, 1
        %s640 = smul.addr %s639, 16
        %s641 = scalar_lea.vmem [#allocation16], %s640
        %v643 = vld [vmem:[%s2] sm:$0x1]
        %v644 = vld [vmem:[%s3] sm:$0x1]
        %v645 = vld [vmem:[%s565] sm:$0xff]
        %v646 = vld [vmem:[%s565 + $0x8] sm:$0xff]
        %647 = vadd.xlane.f32.xlu0 %v645
        %v648 = vpop.xlane.xlu0 %647
        %649 = vadd.xlane.f32.xlu0 %v646
        %v650 = vpop.xlane.xlu0 %649
        %v651 = vrcp.pop 128.0
        %v652 = vmul.f32 %v648, %v651
        %v653 = vmul.f32 %v650, %v651
        %v654 = vsub.f32 %v645, %v652
        %v655 = vsub.f32 %v646, %v653
        %v656 = vmul.f32 %v654, %v654
        %v657 = vmul.f32 %v655, %v655
        %658 = vadd.xlane.f32.xlu0 %v656
        %v659 = vpop.xlane.xlu0 %658
        %660 = vadd.xlane.f32.xlu0 %v657
        %v661 = vpop.xlane.xlu0 %660
        %v662 = vmul.f32 %v659, %v651
        %v663 = vmul.f32 %v661, %v651
        %v664 = vadd.f32 %v662, 1e-05
        %v665 = vadd.f32 %v663, 1e-05
        %v666 = vrsqrt.pop %v664
        %v667 = vrsqrt.pop %v665
        %v668 = vmul.f32 %v654, %v666
        %v669 = vmul.f32 %v655, %v667
        %v671 = vlaneseq
        %v672 = vshrl.u32 %v671, 7
        %v673 = vsub.s32 0, %v672
        %v674 = vrot.slane %v643, %v673
        %v676 = vmul.f32 %v668, %v674
        %v677 = vmul.f32 %v669, %v674
        %v679 = vlaneseq
        %v680 = vshrl.u32 %v679, 7
        %v681 = vsub.s32 0, %v680
        %v682 = vrot.slane %v644, %v681
        %v684 = vadd.f32 %v676, %v682
        %v685 = vadd.f32 %v677, %v682
        %v686 = vpack.c.bf16 %v685, %v684
        %v687 = vld [vmem:[#allocation7] sm:$0xf]
        %v688 = vld [vmem:[#allocation7 + $0x4] sm:$0xf]
        %v689 = vld [vmem:[#allocation7 + $0x8] sm:$0xf]
        %v690 = vld [vmem:[#allocation7 + $0xc] sm:$0xf]
        %v691 = vld [vmem:[#allocation7 + $0x10] sm:$0xf]
        %v692 = vld [vmem:[#allocation7 + $0x14] sm:$0xf]
        %v693 = vld [vmem:[#allocation7 + $0x18] sm:$0xf]
        %v694 = vld [vmem:[#allocation7 + $0x1c] sm:$0xf]
        %v695 = vld [vmem:[#allocation7 + $0x20] sm:$0xf]
        %v696 = vld [vmem:[#allocation7 + $0x24] sm:$0xf]
        %v697 = vld [vmem:[#allocation7 + $0x28] sm:$0xf]
        %v698 = vld [vmem:[#allocation7 + $0x2c] sm:$0xf]
        %v699 = vld [vmem:[#allocation7 + $0x30] sm:$0xf]
        %v700 = vld [vmem:[#allocation7 + $0x34] sm:$0xf]
        %v701 = vld [vmem:[#allocation7 + $0x38] sm:$0xf]
        %v702 = vld [vmem:[#allocation7 + $0x3c] sm:$0xf]
        %v703 = vld [vmem:[%s5] sm:$0x1]
        %v705 = vlaneseq
        %v706 = vshrl.u32 %v705, 7
        %v707 = vsub.s32 0, %v706
        %v708 = vrot.slane %v703, %v707
        %v726 = vunpack.c.l.b16 %v687
        %v727 = vunpack.c.l.b16 %v688
        %v728 = vunpack.c.l.b16 %v689
        %v729 = vunpack.c.l.b16 %v690
        %v730 = vunpack.c.l.b16 %v691
        %v731 = vunpack.c.l.b16 %v692
        %v732 = vunpack.c.l.b16 %v693
        %v733 = vunpack.c.l.b16 %v694
        %v734 = vunpack.c.l.b16 %v695
        %v735 = vunpack.c.l.b16 %v696
        %v736 = vunpack.c.l.b16 %v697
        %v737 = vunpack.c.l.b16 %v698
        %v738 = vunpack.c.l.b16 %v699
        %v739 = vunpack.c.l.b16 %v700
        %v740 = vunpack.c.l.b16 %v701
        %v741 = vunpack.c.l.b16 %v702
        %v742 = vpack.c.b16 %v727, %v726
        %v743 = vpack.c.b16 %v729, %v728
        %v744 = vpack.c.b16 %v731, %v730
        %v745 = vpack.c.b16 %v733, %v732
        %v746 = vpack.c.b16 %v735, %v734
        %v747 = vpack.c.b16 %v737, %v736
        %v748 = vpack.c.b16 %v739, %v738
        %v749 = vpack.c.b16 %v741, %v740
        %758 = vmatprep.subr.bf16.mxu0 0
        %759 = vmatpush1.bf16.msra.mxu0 %v742
        %760 = vmatprep.subr.bf16.mxu0 0
        %761 = vmatpush1.bf16.msra.mxu0 %v743
        %762 = vmatprep.subr.bf16.mxu0 0
        %763 = vmatpush1.bf16.msra.mxu0 %v744
        %764 = vmatprep.subr.bf16.mxu0 0
        %765 = vmatpush1.bf16.msra.mxu0 %v745
        %766 = vmatprep.subr.bf16.mxu0 0
        %767 = vmatpush1.bf16.msra.mxu0 %v746
        %768 = vmatprep.subr.bf16.mxu0 0
        %769 = vmatpush1.bf16.msra.mxu0 %v747
        %770 = vmatprep.subr.bf16.mxu0 0
        %771 = vmatpush1.bf16.msra.mxu0 %v748
        %772 = vmatprep.subr.bf16.mxu0 0
        %773 = vmatpush1.bf16.msra.mxu0 %v749
        %774 = vmatprep.subr.bf16.mxu0 0
        %775 = vmatpush1.bf16.msra.mxu0 0
        %776 = vmatprep.subr.bf16.mxu0 0
        %777 = vmatpush1.bf16.msra.mxu0 0
        %778 = vmatprep.subr.bf16.mxu0 0
        %779 = vmatpush1.bf16.msra.mxu0 0
        %780 = vmatprep.subr.bf16.mxu0 0
        %781 = vmatpush1.bf16.msra.mxu0 0
        %782 = vmatprep.subr.bf16.mxu0 0
        %783 = vmatpush1.bf16.msra.mxu0 0
        %784 = vmatprep.subr.bf16.mxu0 0
        %785 = vmatpush1.bf16.msra.mxu0 0
        %786 = vmatprep.subr.bf16.mxu0 0
        %787 = vmatpush1.bf16.msra.mxu0 0
        %788 = vmatprep.subr.bf16.mxu0 0
        %789 = vmatpush1.bf16.msra.mxu0 0
        %790 = vmatprep.mubr.bf16.mxu0 0
        %791 = vmatmul.mubr.bf16.gmra.mrb[0].mxu0 %v686
        %v792 = vpop.f32.mrb[0].mxu0
        %v793 = vadd.f32 %v708, %v792
        %v794 = vpop.f32.mrb[0].mxu0
        %v795 = vpop.f32.mrb[0].mxu0
        %v796 = vadd.f32 %v708, %v795
        %v797 = vpop.f32.mrb[0].mxu0
        %798 = vdwg.mxu0
        %v799 = vld [vmem:[#allocation8] sm:$0xf]
        %v800 = vld [vmem:[#allocation8 + $0x4] sm:$0xf]
        %v801 = vld [vmem:[#allocation8 + $0x8] sm:$0xf]
        %v802 = vld [vmem:[#allocation8 + $0xc] sm:$0xf]
        %v803 = vld [vmem:[#allocation8 + $0x10] sm:$0xf]
        %v804 = vld [vmem:[#allocation8 + $0x14] sm:$0xf]
        %v805 = vld [vmem:[#allocation8 + $0x18] sm:$0xf]
        %v806 = vld [vmem:[#allocation8 + $0x1c] sm:$0xf]
        %v807 = vld [vmem:[#allocation8 + $0x20] sm:$0xf]
        %v808 = vld [vmem:[#allocation8 + $0x24] sm:$0xf]
        %v809 = vld [vmem:[#allocation8 + $0x28] sm:$0xf]
        %v810 = vld [vmem:[#allocation8 + $0x2c] sm:$0xf]
        %v811 = vld [vmem:[#allocation8 + $0x30] sm:$0xf]
        %v812 = vld [vmem:[#allocation8 + $0x34] sm:$0xf]
        %v813 = vld [vmem:[#allocation8 + $0x38] sm:$0xf]
        %v814 = vld [vmem:[#allocation8 + $0x3c] sm:$0xf]
        %v815 = vld [vmem:[%s7] sm:$0x1]
        %v817 = vlaneseq
        %v818 = vshrl.u32 %v817, 7
        %v819 = vsub.s32 0, %v818
        %v820 = vrot.slane %v815, %v819
        %v838 = vunpack.c.l.b16 %v799
        %v839 = vunpack.c.l.b16 %v800
        %v840 = vunpack.c.l.b16 %v801
        %v841 = vunpack.c.l.b16 %v802
        %v842 = vunpack.c.l.b16 %v803
        %v843 = vunpack.c.l.b16 %v804
        %v844 = vunpack.c.l.b16 %v805
        %v845 = vunpack.c.l.b16 %v806
        %v846 = vunpack.c.l.b16 %v807
        %v847 = vunpack.c.l.b16 %v808
        %v848 = vunpack.c.l.b16 %v809
        %v849 = vunpack.c.l.b16 %v810
        %v850 = vunpack.c.l.b16 %v811
        %v851 = vunpack.c.l.b16 %v812
        %v852 = vunpack.c.l.b16 %v813
        %v853 = vunpack.c.l.b16 %v814
        %v854 = vpack.c.b16 %v839, %v838
        %v855 = vpack.c.b16 %v841, %v840
        %v856 = vpack.c.b16 %v843, %v842
        %v857 = vpack.c.b16 %v845, %v844
        %v858 = vpack.c.b16 %v847, %v846
        %v859 = vpack.c.b16 %v849, %v848
        %v860 = vpack.c.b16 %v851, %v850
        %v861 = vpack.c.b16 %v853, %v852
        %870 = vmatprep.subr.bf16.mxu0 0
        %871 = vmatpush1.bf16.msra.mxu0 %v854
        %872 = vmatprep.subr.bf16.mxu0 0
        %873 = vmatpush1.bf16.msra.mxu0 %v855
        %874 = vmatprep.subr.bf16.mxu0 0
        %875 = vmatpush1.bf16.msra.mxu0 %v856
        %876 = vmatprep.subr.bf16.mxu0 0
        %877 = vmatpush1.bf16.msra.mxu0 %v857
        %878 = vmatprep.subr.bf16.mxu0 0
        %879 = vmatpush1.bf16.msra.mxu0 %v858
        %880 = vmatprep.subr.bf16.mxu0 0
        %881 = vmatpush1.bf16.msra.mxu0 %v859
        %882 = vmatprep.subr.bf16.mxu0 0
        %883 = vmatpush1.bf16.msra.mxu0 %v860
        %884 = vmatprep.subr.bf16.mxu0 0
        %885 = vmatpush1.bf16.msra.mxu0 %v861
        %886 = vmatprep.subr.bf16.mxu0 0
        %887 = vmatpush1.bf16.msra.mxu0 0
        %888 = vmatprep.subr.bf16.mxu0 0
        %889 = vmatpush1.bf16.msra.mxu0 0
        %890 = vmatprep.subr.bf16.mxu0 0
        %891 = vmatpush1.bf16.msra.mxu0 0
        %892 = vmatprep.subr.bf16.mxu0 0
        %893 = vmatpush1.bf16.msra.mxu0 0
        %894 = vmatprep.subr.bf16.mxu0 0
        %895 = vmatpush1.bf16.msra.mxu0 0
        %896 = vmatprep.subr.bf16.mxu0 0
        %897 = vmatpush1.bf16.msra.mxu0 0
        %898 = vmatprep.subr.bf16.mxu0 0
        %899 = vmatpush1.bf16.msra.mxu0 0
        %900 = vmatprep.subr.bf16.mxu0 0
        %901 = vmatpush1.bf16.msra.mxu0 0
        %902 = vmatprep.mubr.bf16.mxu0 0
        %903 = vmatmul.mubr.bf16.gmra.mrb[0].mxu0 %v686
        %v904 = vpop.f32.mrb[0].mxu0
        %v905 = vadd.f32 %v820, %v904
        %v906 = vpop.f32.mrb[0].mxu0
        %v907 = vpop.f32.mrb[0].mxu0
        %v908 = vadd.f32 %v820, %v907
        %v909 = vpop.f32.mrb[0].mxu0
        %910 = vdwg.mxu0
        %v911 = vld [vmem:[#allocation10] sm:$0xf]
        %v912 = vld [vmem:[#allocation10 + $0x4] sm:$0xf]
        %v913 = vld [vmem:[#allocation10 + $0x8] sm:$0xf]
        %v914 = vld [vmem:[#allocation10 + $0xc] sm:$0xf]
        %v915 = vld [vmem:[#allocation10 + $0x10] sm:$0xf]
        %v916 = vld [vmem:[#allocation10 + $0x14] sm:$0xf]
        %v917 = vld [vmem:[#allocation10 + $0x18] sm:$0xf]
        %v918 = vld [vmem:[#allocation10 + $0x1c] sm:$0xf]
        %v919 = vld [vmem:[#allocation10 + $0x20] sm:$0xf]
        %v920 = vld [vmem:[#allocation10 + $0x24] sm:$0xf]
        %v921 = vld [vmem:[#allocation10 + $0x28] sm:$0xf]
        %v922 = vld [vmem:[#allocation10 + $0x2c] sm:$0xf]
        %v923 = vld [vmem:[#allocation10 + $0x30] sm:$0xf]
        %v924 = vld [vmem:[#allocation10 + $0x34] sm:$0xf]
        %v925 = vld [vmem:[#allocation10 + $0x38] sm:$0xf]
        %v926 = vld [vmem:[#allocation10 + $0x3c] sm:$0xf]
        %v927 = vld [vmem:[%s9] sm:$0x1]
        %v929 = vlaneseq
        %v930 = vshrl.u32 %v929, 7
        %v931 = vsub.s32 0, %v930
        %v932 = vrot.slane %v927, %v931
        %v950 = vunpack.c.l.b16 %v911
        %v951 = vunpack.c.l.b16 %v912
        %v952 = vunpack.c.l.b16 %v913
        %v953 = vunpack.c.l.b16 %v914
        %v954 = vunpack.c.l.b16 %v915
        %v955 = vunpack.c.l.b16 %v916
        %v956 = vunpack.c.l.b16 %v917
        %v957 = vunpack.c.l.b16 %v918
        %v958 = vunpack.c.l.b16 %v919
        %v959 = vunpack.c.l.b16 %v920
        %v960 = vunpack.c.l.b16 %v921
        %v961 = vunpack.c.l.b16 %v922
        %v962 = vunpack.c.l.b16 %v923
        %v963 = vunpack.c.l.b16 %v924
        %v964 = vunpack.c.l.b16 %v925
        %v965 = vunpack.c.l.b16 %v926
        %v966 = vpack.c.b16 %v951, %v950
        %v967 = vpack.c.b16 %v953, %v952
        %v968 = vpack.c.b16 %v955, %v954
        %v969 = vpack.c.b16 %v957, %v956
        %v970 = vpack.c.b16 %v959, %v958
        %v971 = vpack.c.b16 %v961, %v960
        %v972 = vpack.c.b16 %v963, %v962
        %v973 = vpack.c.b16 %v965, %v964
        %982 = vmatprep.subr.bf16.mxu0 0
        %983 = vmatpush1.bf16.msra.mxu0 %v966
        %984 = vmatprep.subr.bf16.mxu0 0
        %985 = vmatpush1.bf16.msra.mxu0 %v967
        %986 = vmatprep.subr.bf16.mxu0 0
        %987 = vmatpush1.bf16.msra.mxu0 %v968
        %988 = vmatprep.subr.bf16.mxu0 0
        %989 = vmatpush1.bf16.msra.mxu0 %v969
        %990 = vmatprep.subr.bf16.mxu0 0
        %991 = vmatpush1.bf16.msra.mxu0 %v970
        %992 = vmatprep.subr.bf16.mxu0 0
        %993 = vmatpush1.bf16.msra.mxu0 %v971
        %994 = vmatprep.subr.bf16.mxu0 0
        %995 = vmatpush1.bf16.msra.mxu0 %v972
        %996 = vmatprep.subr.bf16.mxu0 0
        %997 = vmatpush1.bf16.msra.mxu0 %v973
        %998 = vmatprep.subr.bf16.mxu0 0
        %999 = vmatpush1.bf16.msra.mxu0 0
        %1000 = vmatprep.subr.bf16.mxu0 0
        %1001 = vmatpush1.bf16.msra.mxu0 0
        %1002 = vmatprep.subr.bf16.mxu0 0
        %1003 = vmatpush1.bf16.msra.mxu0 0
        %1004 = vmatprep.subr.bf16.mxu0 0
        %1005 = vmatpush1.bf16.msra.mxu0 0
        %1006 = vmatprep.subr.bf16.mxu0 0
        %1007 = vmatpush1.bf16.msra.mxu0 0
        %1008 = vmatprep.subr.bf16.mxu0 0
        %1009 = vmatpush1.bf16.msra.mxu0 0
        %1010 = vmatprep.subr.bf16.mxu0 0
        %1011 = vmatpush1.bf16.msra.mxu0 0
        %1012 = vmatprep.subr.bf16.mxu0 0
        %1013 = vmatpush1.bf16.msra.mxu0 0
        %1014 = vmatprep.mubr.bf16.mxu0 0
        %1015 = vmatmul.mubr.bf16.gmra.mrb[0].mxu0 %v686
        %v1016 = vpop.f32.mrb[0].mxu0
        %v1017 = vadd.f32 %v932, %v1016
        %v1018 = vpop.f32.mrb[0].mxu0
        %v1019 = vpop.f32.mrb[0].mxu0
        %v1020 = vadd.f32 %v932, %v1019
        %v1021 = vpop.f32.mrb[0].mxu0
        %1022 = vdwg.mxu0
        %1025 = vrot.lane.b32.xlu0 %v793, 96
        %v1026 = vpop.permute.xlu0 %1025
        %1027 = vrot.lane.b32.xlu0 %v796, 96
        %v1028 = vpop.permute.xlu0 %1027
        %1031 = vrot.lane.b32.xlu0 %v793, 64
        %v1032 = vpop.permute.xlu0 %1031
        %1033 = vrot.lane.b32.xlu0 %v796, 64
        %v1034 = vpop.permute.xlu0 %1033
        %1037 = vrot.lane.b32.xlu0 %v793, 32
        %v1038 = vpop.permute.xlu0 %1037
        %1039 = vrot.lane.b32.xlu0 %v796, 32
        %v1040 = vpop.permute.xlu0 %1039
        %v1043 = vpack.c.bf16 %v796, %v793
        %v1044 = vpack.c.bf16 %v1028, %v1026
        %v1045 = vpack.c.bf16 %v1034, %v1032
        %v1046 = vpack.c.bf16 %v1040, %v1038
        %1049 = vrot.lane.b32.xlu0 %v905, 96
        %v1050 = vpop.permute.xlu0 %1049
        %1051 = vrot.lane.b32.xlu0 %v908, 96
        %v1052 = vpop.permute.xlu0 %1051
        %1055 = vrot.lane.b32.xlu0 %v905, 64
        %v1056 = vpop.permute.xlu0 %1055
        %1057 = vrot.lane.b32.xlu0 %v908, 64
        %v1058 = vpop.permute.xlu0 %1057
        %1061 = vrot.lane.b32.xlu0 %v905, 32
        %v1062 = vpop.permute.xlu0 %1061
        %1063 = vrot.lane.b32.xlu0 %v908, 32
        %v1064 = vpop.permute.xlu0 %1063
        %v1067 = vpack.c.bf16 %v908, %v905
        %v1068 = vpack.c.bf16 %v1052, %v1050
        %v1069 = vpack.c.bf16 %v1058, %v1056
        %v1070 = vpack.c.bf16 %v1064, %v1062
        %1073 = vrot.lane.b32.xlu0 %v1017, 96
        %v1074 = vpop.permute.xlu0 %1073
        %1075 = vrot.lane.b32.xlu0 %v1020, 96
        %v1076 = vpop.permute.xlu0 %1075
        %1079 = vrot.lane.b32.xlu0 %v1017, 64
        %v1080 = vpop.permute.xlu0 %1079
        %1081 = vrot.lane.b32.xlu0 %v1020, 64
        %v1082 = vpop.permute.xlu0 %1081
        %1085 = vrot.lane.b32.xlu0 %v1017, 32
        %v1086 = vpop.permute.xlu0 %1085
        %1087 = vrot.lane.b32.xlu0 %v1020, 32
        %v1088 = vpop.permute.xlu0 %1087
        %v1091 = vpack.c.bf16 %v1020, %v1017
        %v1092 = vpack.c.bf16 %v1076, %v1074
        %v1093 = vpack.c.bf16 %v1082, %v1080
        %v1094 = vpack.c.bf16 %v1088, %v1086
        %v1095 = vld [vmem:[#allocation5] sm:$0xff]
        %v1096 = vld [vmem:[#allocation5 + $0x8] sm:$0xff]
        %vm1097 = vcmask 261120
        %v1099 = vsel %vm1097, %v1043, 0
        %v1102 = vsel %vm1097, %v1067, 0
        %1104 = vmatprep.subr.bf16.mxu0 0
        %1105 = vmatpush1.bf16.xpose.msra.mxu0 %v1102
        %1106 = vmatprep.subr.bf16.mxu0 0
        %1107 = vmatpush1.bf16.xpose.msra.mxu0 0
        %1108 = vmatprep.subr.bf16.mxu0 0
        %1109 = vmatpush1.bf16.xpose.msra.mxu0 0
        %1110 = vmatprep.subr.bf16.mxu0 0
        %1111 = vmatpush1.bf16.xpose.msra.mxu0 0
        %1112 = vmatprep.subr.bf16.mxu0 0
        %1113 = vmatpush1.bf16.xpose.msra.mxu0 0
        %1114 = vmatprep.subr.bf16.mxu0 0
        %1115 = vmatpush1.bf16.xpose.msra.mxu0 0
        %1116 = vmatprep.subr.bf16.mxu0 0
        %1117 = vmatpush1.bf16.xpose.msra.mxu0 0
        %1118 = vmatprep.subr.bf16.mxu0 0
        %1119 = vmatpush1.bf16.xpose.msra.mxu0 0
        %1120 = vmatprep.subr.bf16.mxu0 0
        %1121 = vmatpush1.bf16.xpose.msra.mxu0 0
        %1122 = vmatprep.subr.bf16.mxu0 0
        %1123 = vmatpush1.bf16.xpose.msra.mxu0 0
        %1124 = vmatprep.subr.bf16.mxu0 0
        %1125 = vmatpush1.bf16.xpose.msra.mxu0 0
        %1126 = vmatprep.subr.bf16.mxu0 0
        %1127 = vmatpush1.bf16.xpose.msra.mxu0 0
        %1128 = vmatprep.subr.bf16.mxu0 0
        %1129 = vmatpush1.bf16.xpose.msra.mxu0 0
        %1130 = vmatprep.subr.bf16.mxu0 0
        %1131 = vmatpush1.bf16.xpose.msra.mxu0 0
        %1132 = vmatprep.subr.bf16.mxu0 0
        %1133 = vmatpush1.bf16.xpose.msra.mxu0 0
        %1134 = vmatprep.subr.bf16.mxu0 0
        %1135 = vmatpush1.bf16.xpose.msra.mxu0 0
        %1136 = vmatprep.mubr.bf16.mxu0 0
        %1137 = vmatmul.mubr.bf16.gmra.mrb[0].mxu0 %v1099
        %v1138 = vpop.f32.mrb[0].mxu0
        %v1139 = vadd.f32 %v1095, %v1138
        %v1140 = vpop.f32.mrb[0].mxu0
        %v1141 = vpop.f32.mrb[0].mxu0
        %v1142 = vadd.f32 %v1096, %v1141
        %v1143 = vpop.f32.mrb[0].mxu0
        %1144 = vdwg.mxu0
        %v1146 = vsel %vm1097, %v1044, 0
        %v1149 = vsel %vm1097, %v1068, 0
        %1151 = vmatprep.subr.bf16.mxu0 0
        %1152 = vmatpush1.bf16.xpose.msra.mxu0 %v1149
        %1153 = vmatprep.subr.bf16.mxu0 0
        %1154 = vmatpush1.bf16.xpose.msra.mxu0 0
        %1155 = vmatprep.subr.bf16.mxu0 0
        %1156 = vmatpush1.bf16.xpose.msra.mxu0 0
        %1157 = vmatprep.subr.bf16.mxu0 0
        %1158 = vmatpush1.bf16.xpose.msra.mxu0 0
        %1159 = vmatprep.subr.bf16.mxu0 0
        %1160 = vmatpush1.bf16.xpose.msra.mxu0 0
        %1161 = vmatprep.subr.bf16.mxu0 0
        %1162 = vmatpush1.bf16.xpose.msra.mxu0 0
        %1163 = vmatprep.subr.bf16.mxu0 0
        %1164 = vmatpush1.bf16.xpose.msra.mxu0 0
        %1165 = vmatprep.subr.bf16.mxu0 0
        %1166 = vmatpush1.bf16.xpose.msra.mxu0 0
        %1167 = vmatprep.subr.bf16.mxu0 0
        %1168 = vmatpush1.bf16.xpose.msra.mxu0 0
        %1169 = vmatprep.subr.bf16.mxu0 0
        %1170 = vmatpush1.bf16.xpose.msra.mxu0 0
        %1171 = vmatprep.subr.bf16.mxu0 0
        %1172 = vmatpush1.bf16.xpose.msra.mxu0 0
        %1173 = vmatprep.subr.bf16.mxu0 0
        %1174 = vmatpush1.bf16.xpose.msra.mxu0 0
        %1175 = vmatprep.subr.bf16.mxu0 0
        %1176 = vmatpush1.bf16.xpose.msra.mxu0 0
        %1177 = vmatprep.subr.bf16.mxu0 0
        %1178 = vmatpush1.bf16.xpose.msra.mxu0 0
        %1179 = vmatprep.subr.bf16.mxu0 0
        %1180 = vmatpush1.bf16.xpose.msra.mxu0 0
        %1181 = vmatprep.subr.bf16.mxu0 0
        %1182 = vmatpush1.bf16.xpose.msra.mxu0 0
        %1183 = vmatprep.mubr.bf16.mxu0 0
        %1184 = vmatmul.mubr.bf16.gmra.mrb[0].mxu0 %v1146
        %v1185 = vpop.f32.mrb[0].mxu0
        %v1186 = vadd.f32 %v1095, %v1185
        %v1187 = vpop.f32.mrb[0].mxu0
        %v1188 = vpop.f32.mrb[0].mxu0
        %v1189 = vadd.f32 %v1096, %v1188
        %v1190 = vpop.f32.mrb[0].mxu0
        %1191 = vdwg.mxu0
        %v1193 = vsel %vm1097, %v1045, 0
        %v1196 = vsel %vm1097, %v1069, 0
        %1198 = vmatprep.subr.bf16.mxu0 0
        %1199 = vmatpush1.bf16.xpose.msra.mxu0 %v1196
        %1200 = vmatprep.subr.bf16.mxu0 0
        %1201 = vmatpush1.bf16.xpose.msra.mxu0 0
        %1202 = vmatprep.subr.bf16.mxu0 0
        %1203 = vmatpush1.bf16.xpose.msra.mxu0 0
        %1204 = vmatprep.subr.bf16.mxu0 0
        %1205 = vmatpush1.bf16.xpose.msra.mxu0 0
        %1206 = vmatprep.subr.bf16.mxu0 0
        %1207 = vmatpush1.bf16.xpose.msra.mxu0 0
        %1208 = vmatprep.subr.bf16.mxu0 0
        %1209 = vmatpush1.bf16.xpose.msra.mxu0 0
        %1210 = vmatprep.subr.bf16.mxu0 0
        %1211 = vmatpush1.bf16.xpose.msra.mxu0 0
        %1212 = vmatprep.subr.bf16.mxu0 0
        %1213 = vmatpush1.bf16.xpose.msra.mxu0 0
        %1214 = vmatprep.subr.bf16.mxu0 0
        %1215 = vmatpush1.bf16.xpose.msra.mxu0 0
        %1216 = vmatprep.subr.bf16.mxu0 0
        %1217 = vmatpush1.bf16.xpose.msra.mxu0 0
        %1218 = vmatprep.subr.bf16.mxu0 0
        %1219 = vmatpush1.bf16.xpose.msra.mxu0 0
        %1220 = vmatprep.subr.bf16.mxu0 0
        %1221 = vmatpush1.bf16.xpose.msra.mxu0 0
        %1222 = vmatprep.subr.bf16.mxu0 0
        %1223 = vmatpush1.bf16.xpose.msra.mxu0 0
        %1224 = vmatprep.subr.bf16.mxu0 0
        %1225 = vmatpush1.bf16.xpose.msra.mxu0 0
        %1226 = vmatprep.subr.bf16.mxu0 0
        %1227 = vmatpush1.bf16.xpose.msra.mxu0 0
        %1228 = vmatprep.subr.bf16.mxu0 0
        %1229 = vmatpush1.bf16.xpose.msra.mxu0 0
        %1230 = vmatprep.mubr.bf16.mxu0 0
        %1231 = vmatmul.mubr.bf16.gmra.mrb[0].mxu0 %v1193
        %v1232 = vpop.f32.mrb[0].mxu0
        %v1233 = vadd.f32 %v1095, %v1232
        %v1234 = vpop.f32.mrb[0].mxu0
        %v1235 = vpop.f32.mrb[0].mxu0
        %v1236 = vadd.f32 %v1096, %v1235
        %v1237 = vpop.f32.mrb[0].mxu0
        %1238 = vdwg.mxu0
        %v1240 = vsel %vm1097, %v1046, 0
        %v1243 = vsel %vm1097, %v1070, 0
        %1245 = vmatprep.subr.bf16.mxu0 0
        %1246 = vmatpush1.bf16.xpose.msra.mxu0 %v1243
        %1247 = vmatprep.subr.bf16.mxu0 0
        %1248 = vmatpush1.bf16.xpose.msra.mxu0 0
        %1249 = vmatprep.subr.bf16.mxu0 0
        %1250 = vmatpush1.bf16.xpose.msra.mxu0 0
        %1251 = vmatprep.subr.bf16.mxu0 0
        %1252 = vmatpush1.bf16.xpose.msra.mxu0 0
        %1253 = vmatprep.subr.bf16.mxu0 0
        %1254 = vmatpush1.bf16.xpose.msra.mxu0 0
        %1255 = vmatprep.subr.bf16.mxu0 0
        %1256 = vmatpush1.bf16.xpose.msra.mxu0 0
        %1257 = vmatprep.subr.bf16.mxu0 0
        %1258 = vmatpush1.bf16.xpose.msra.mxu0 0
        %1259 = vmatprep.subr.bf16.mxu0 0
        %1260 = vmatpush1.bf16.xpose.msra.mxu0 0
        %1261 = vmatprep.subr.bf16.mxu0 0
        %1262 = vmatpush1.bf16.xpose.msra.mxu0 0
        %1263 = vmatprep.subr.bf16.mxu0 0
        %1264 = vmatpush1.bf16.xpose.msra.mxu0 0
        %1265 = vmatprep.subr.bf16.mxu0 0
        %1266 = vmatpush1.bf16.xpose.msra.mxu0 0
        %1267 = vmatprep.subr.bf16.mxu0 0
        %1268 = vmatpush1.bf16.xpose.msra.mxu0 0
        %1269 = vmatprep.subr.bf16.mxu0 0
        %1270 = vmatpush1.bf16.xpose.msra.mxu0 0
        %1271 = vmatprep.subr.bf16.mxu0 0
        %1272 = vmatpush1.bf16.xpose.msra.mxu0 0
        %1273 = vmatprep.subr.bf16.mxu0 0
        %1274 = vmatpush1.bf16.xpose.msra.mxu0 0
        %1275 = vmatprep.subr.bf16.mxu0 0
        %1276 = vmatpush1.bf16.xpose.msra.mxu0 0
        %1277 = vmatprep.mubr.bf16.mxu0 0
        %1278 = vmatmul.mubr.bf16.gmra.mrb[0].mxu0 %v1240
        %v1279 = vpop.f32.mrb[0].mxu0
        %v1280 = vadd.f32 %v1095, %v1279
        %v1281 = vpop.f32.mrb[0].mxu0
        %v1282 = vpop.f32.mrb[0].mxu0
        %v1283 = vadd.f32 %v1096, %v1282
        %v1284 = vpop.f32.mrb[0].mxu0
        %1285 = vdwg.mxu0
        %vm1286 = vcmask 130048
        %v1287 = vsel %vm1286, %v1139, -inf
        %1288 = vmax.xlane.f32.xlu0 %v1287
        %v1289 = vpop.xlane.xlu0 %1288
        %v1290 = vsel %vm1286, %v1142, -inf
        %1291 = vmax.xlane.f32.xlu0 %v1290
        %v1292 = vpop.xlane.xlu0 %1291
        %v1293 = vsel %vm1286, %v1186, -inf
        %1294 = vmax.xlane.f32.xlu0 %v1293
        %v1295 = vpop.xlane.xlu0 %1294
        %v1296 = vsel %vm1286, %v1189, -inf
        %1297 = vmax.xlane.f32.xlu0 %v1296
        %v1298 = vpop.xlane.xlu0 %1297
        %v1299 = vsel %vm1286, %v1233, -inf
        %1300 = vmax.xlane.f32.xlu0 %v1299
        %v1301 = vpop.xlane.xlu0 %1300
        %v1302 = vsel %vm1286, %v1236, -inf
        %1303 = vmax.xlane.f32.xlu0 %v1302
        %v1304 = vpop.xlane.xlu0 %1303
        %v1305 = vsel %vm1286, %v1280, -inf
        %1306 = vmax.xlane.f32.xlu0 %v1305
        %v1307 = vpop.xlane.xlu0 %1306
        %v1308 = vsel %vm1286, %v1283, -inf
        %1309 = vmax.xlane.f32.xlu0 %v1308
        %v1310 = vpop.xlane.xlu0 %1309
        %v1311 = vsub.f32 %v1139, %v1289
        %v1312 = vsub.f32 %v1142, %v1292
        %v1313 = vsub.f32 %v1186, %v1295
        %v1314 = vsub.f32 %v1189, %v1298
        %v1315 = vsub.f32 %v1233, %v1301
        %v1316 = vsub.f32 %v1236, %v1304
        %v1317 = vsub.f32 %v1280, %v1307
        %v1318 = vsub.f32 %v1283, %v1310
        %v1319 = vmul.f32 %v1311, 1.442695
        %v1320 = vpow.pop %v1319
        %v1321 = vmul.f32 %v1312, 1.442695
        %v1322 = vpow.pop %v1321
        %v1323 = vmul.f32 %v1313, 1.442695
        %v1324 = vpow.pop %v1323
        %v1325 = vmul.f32 %v1314, 1.442695
        %v1326 = vpow.pop %v1325
        %v1327 = vmul.f32 %v1315, 1.442695
        %v1328 = vpow.pop %v1327
        %v1329 = vmul.f32 %v1316, 1.442695
        %v1330 = vpow.pop %v1329
        %v1331 = vmul.f32 %v1317, 1.442695
        %v1332 = vpow.pop %v1331
        %v1333 = vmul.f32 %v1318, 1.442695
        %v1334 = vpow.pop %v1333
        %v1335 = vsel %vm1286, %v1320, 0.0
        %1336 = vadd.xlane.f32.xlu0 %v1335
        %v1337 = vpop.xlane.xlu0 %1336
        %v1338 = vsel %vm1286, %v1322, 0.0
        %1339 = vadd.xlane.f32.xlu0 %v1338
        %v1340 = vpop.xlane.xlu0 %1339
        %v1341 = vsel %vm1286, %v1324, 0.0
        %1342 = vadd.xlane.f32.xlu0 %v1341
        %v1343 = vpop.xlane.xlu0 %1342
        %v1344 = vsel %vm1286, %v1326, 0.0
        %1345 = vadd.xlane.f32.xlu0 %v1344
        %v1346 = vpop.xlane.xlu0 %1345
        %v1347 = vsel %vm1286, %v1328, 0.0
        %1348 = vadd.xlane.f32.xlu0 %v1347
        %v1349 = vpop.xlane.xlu0 %1348
        %v1350 = vsel %vm1286, %v1330, 0.0
        %1351 = vadd.xlane.f32.xlu0 %v1350
        %v1352 = vpop.xlane.xlu0 %1351
        %v1353 = vsel %vm1286, %v1332, 0.0
        %1354 = vadd.xlane.f32.xlu0 %v1353
        %v1355 = vpop.xlane.xlu0 %1354
        %v1356 = vsel %vm1286, %v1334, 0.0
        %1357 = vadd.xlane.f32.xlu0 %v1356
        %v1358 = vpop.xlane.xlu0 %1357
        %v1359 = vpack.c.bf16 %v1322, %v1320
        %v1360 = vpack.c.bf16 %v1326, %v1324
        %v1361 = vpack.c.bf16 %v1330, %v1328
        %v1362 = vpack.c.bf16 %v1334, %v1332
        %v1364 = vsel %vm1286, %v1359, 0
        %1366 = vmatprep.subr.bf16.mxu0 0
        %1367 = vmatpush1.bf16.msra.mxu0 %v1091
        %1368 = vmatprep.subr.bf16.mxu0 0
        %1369 = vmatpush1.bf16.msra.mxu0 0
        %1370 = vmatprep.subr.bf16.mxu0 0
        %1371 = vmatpush1.bf16.msra.mxu0 0
        %1372 = vmatprep.subr.bf16.mxu0 0
        %1373 = vmatpush1.bf16.msra.mxu0 0
        %1374 = vmatprep.subr.bf16.mxu0 0
        %1375 = vmatpush1.bf16.msra.mxu0 0
        %1376 = vmatprep.subr.bf16.mxu0 0
        %1377 = vmatpush1.bf16.msra.mxu0 0
        %1378 = vmatprep.subr.bf16.mxu0 0
        %1379 = vmatpush1.bf16.msra.mxu0 0
        %1380 = vmatprep.subr.bf16.mxu0 0
        %1381 = vmatpush1.bf16.msra.mxu0 0
        %1382 = vmatprep.subr.bf16.mxu0 0
        %1383 = vmatpush1.bf16.msra.mxu0 0
        %1384 = vmatprep.subr.bf16.mxu0 0
        %1385 = vmatpush1.bf16.msra.mxu0 0
        %1386 = vmatprep.subr.bf16.mxu0 0
        %1387 = vmatpush1.bf16.msra.mxu0 0
        %1388 = vmatprep.subr.bf16.mxu0 0
        %1389 = vmatpush1.bf16.msra.mxu0 0
        %1390 = vmatprep.subr.bf16.mxu0 0
        %1391 = vmatpush1.bf16.msra.mxu0 0
        %1392 = vmatprep.subr.bf16.mxu0 0
        %1393 = vmatpush1.bf16.msra.mxu0 0
        %1394 = vmatprep.subr.bf16.mxu0 0
        %1395 = vmatpush1.bf16.msra.mxu0 0
        %1396 = vmatprep.subr.bf16.mxu0 0
        %1397 = vmatpush1.bf16.msra.mxu0 0
        %1398 = vmatprep.mubr.bf16.mxu0 0
        %1399 = vmatmul.mubr.bf16.gmra.mrb[0].mxu0 %v1364
        %v1400 = vpop.f32.mrb[0].mxu0
        %v1401 = vadd.f32 0.0, %v1400
        %v1402 = vpop.f32.mrb[0].mxu0
        %v1403 = vpop.f32.mrb[0].mxu0
        %v1404 = vadd.f32 0.0, %v1403
        %v1405 = vpop.f32.mrb[0].mxu0
        %1406 = vdwg.mxu0
        %v1408 = vsel %vm1286, %v1360, 0
        %1410 = vmatprep.subr.bf16.mxu0 0
        %1411 = vmatpush1.bf16.msra.mxu0 %v1092
        %1412 = vmatprep.subr.bf16.mxu0 0
        %1413 = vmatpush1.bf16.msra.mxu0 0
        %1414 = vmatprep.subr.bf16.mxu0 0
        %1415 = vmatpush1.bf16.msra.mxu0 0
        %1416 = vmatprep.subr.bf16.mxu0 0
        %1417 = vmatpush1.bf16.msra.mxu0 0
        %1418 = vmatprep.subr.bf16.mxu0 0
        %1419 = vmatpush1.bf16.msra.mxu0 0
        %1420 = vmatprep.subr.bf16.mxu0 0
        %1421 = vmatpush1.bf16.msra.mxu0 0
        %1422 = vmatprep.subr.bf16.mxu0 0
        %1423 = vmatpush1.bf16.msra.mxu0 0
        %1424 = vmatprep.subr.bf16.mxu0 0
        %1425 = vmatpush1.bf16.msra.mxu0 0
        %1426 = vmatprep.subr.bf16.mxu0 0
        %1427 = vmatpush1.bf16.msra.mxu0 0
        %1428 = vmatprep.subr.bf16.mxu0 0
        %1429 = vmatpush1.bf16.msra.mxu0 0
        %1430 = vmatprep.subr.bf16.mxu0 0
        %1431 = vmatpush1.bf16.msra.mxu0 0
        %1432 = vmatprep.subr.bf16.mxu0 0
        %1433 = vmatpush1.bf16.msra.mxu0 0
        %1434 = vmatprep.subr.bf16.mxu0 0
        %1435 = vmatpush1.bf16.msra.mxu0 0
        %1436 = vmatprep.subr.bf16.mxu0 0
        %1437 = vmatpush1.bf16.msra.mxu0 0
        %1438 = vmatprep.subr.bf16.mxu0 0
        %1439 = vmatpush1.bf16.msra.mxu0 0
        %1440 = vmatprep.subr.bf16.mxu0 0
        %1441 = vmatpush1.bf16.msra.mxu0 0
        %1442 = vmatprep.mubr.bf16.mxu0 0
        %1443 = vmatmul.mubr.bf16.gmra.mrb[0].mxu0 %v1408
        %v1444 = vpop.f32.mrb[0].mxu0
        %v1445 = vadd.f32 0.0, %v1444
        %v1446 = vpop.f32.mrb[0].mxu0
        %v1447 = vpop.f32.mrb[0].mxu0
        %v1448 = vadd.f32 0.0, %v1447
        %v1449 = vpop.f32.mrb[0].mxu0
        %1450 = vdwg.mxu0
        %v1452 = vsel %vm1286, %v1361, 0
        %1454 = vmatprep.subr.bf16.mxu0 0
        %1455 = vmatpush1.bf16.msra.mxu0 %v1093
        %1456 = vmatprep.subr.bf16.mxu0 0
        %1457 = vmatpush1.bf16.msra.mxu0 0
        %1458 = vmatprep.subr.bf16.mxu0 0
        %1459 = vmatpush1.bf16.msra.mxu0 0
        %1460 = vmatprep.subr.bf16.mxu0 0
        %1461 = vmatpush1.bf16.msra.mxu0 0
        %1462 = vmatprep.subr.bf16.mxu0 0
        %1463 = vmatpush1.bf16.msra.mxu0 0
        %1464 = vmatprep.subr.bf16.mxu0 0
        %1465 = vmatpush1.bf16.msra.mxu0 0
        %1466 = vmatprep.subr.bf16.mxu0 0
        %1467 = vmatpush1.bf16.msra.mxu0 0
        %1468 = vmatprep.subr.bf16.mxu0 0
        %1469 = vmatpush1.bf16.msra.mxu0 0
        %1470 = vmatprep.subr.bf16.mxu0 0
        %1471 = vmatpush1.bf16.msra.mxu0 0
        %1472 = vmatprep.subr.bf16.mxu0 0
        %1473 = vmatpush1.bf16.msra.mxu0 0
        %1474 = vmatprep.subr.bf16.mxu0 0
        %1475 = vmatpush1.bf16.msra.mxu0 0
        %1476 = vmatprep.subr.bf16.mxu0 0
        %1477 = vmatpush1.bf16.msra.mxu0 0
        %1478 = vmatprep.subr.bf16.mxu0 0
        %1479 = vmatpush1.bf16.msra.mxu0 0
        %1480 = vmatprep.subr.bf16.mxu0 0
        %1481 = vmatpush1.bf16.msra.mxu0 0
        %1482 = vmatprep.subr.bf16.mxu0 0
        %1483 = vmatpush1.bf16.msra.mxu0 0
        %1484 = vmatprep.subr.bf16.mxu0 0
        %1485 = vmatpush1.bf16.msra.mxu0 0
        %1486 = vmatprep.mubr.bf16.mxu0 0
        %1487 = vmatmul.mubr.bf16.gmra.mrb[0].mxu0 %v1452
        %v1488 = vpop.f32.mrb[0].mxu0
        %v1489 = vadd.f32 0.0, %v1488
        %v1490 = vpop.f32.mrb[0].mxu0
        %v1491 = vpop.f32.mrb[0].mxu0
        %v1492 = vadd.f32 0.0, %v1491
        %v1493 = vpop.f32.mrb[0].mxu0
        %1494 = vdwg.mxu0
        %v1496 = vsel %vm1286, %v1362, 0
        %1498 = vmatprep.subr.bf16.mxu0 0
        %1499 = vmatpush1.bf16.msra.mxu0 %v1094
        %1500 = vmatprep.subr.bf16.mxu0 0
        %1501 = vmatpush1.bf16.msra.mxu0 0
        %1502 = vmatprep.subr.bf16.mxu0 0
        %1503 = vmatpush1.bf16.msra.mxu0 0
        %1504 = vmatprep.subr.bf16.mxu0 0
        %1505 = vmatpush1.bf16.msra.mxu0 0
        %1506 = vmatprep.subr.bf16.mxu0 0
        %1507 = vmatpush1.bf16.msra.mxu0 0
        %1508 = vmatprep.subr.bf16.mxu0 0
        %1509 = vmatpush1.bf16.msra.mxu0 0
        %1510 = vmatprep.subr.bf16.mxu0 0
        %1511 = vmatpush1.bf16.msra.mxu0 0
        %1512 = vmatprep.subr.bf16.mxu0 0
        %1513 = vmatpush1.bf16.msra.mxu0 0
        %1514 = vmatprep.subr.bf16.mxu0 0
        %1515 = vmatpush1.bf16.msra.mxu0 0
        %1516 = vmatprep.subr.bf16.mxu0 0
        %1517 = vmatpush1.bf16.msra.mxu0 0
        %1518 = vmatprep.subr.bf16.mxu0 0
        %1519 = vmatpush1.bf16.msra.mxu0 0
        %1520 = vmatprep.subr.bf16.mxu0 0
        %1521 = vmatpush1.bf16.msra.mxu0 0
        %1522 = vmatprep.subr.bf16.mxu0 0
        %1523 = vmatpush1.bf16.msra.mxu0 0
        %1524 = vmatprep.subr.bf16.mxu0 0
        %1525 = vmatpush1.bf16.msra.mxu0 0
        %1526 = vmatprep.subr.bf16.mxu0 0
        %1527 = vmatpush1.bf16.msra.mxu0 0
        %1528 = vmatprep.subr.bf16.mxu0 0
        %1529 = vmatpush1.bf16.msra.mxu0 0
        %1530 = vmatprep.mubr.bf16.mxu0 0
        %1531 = vmatmul.mubr.bf16.gmra.mrb[0].mxu0 %v1496
        %v1532 = vpop.f32.mrb[0].mxu0
        %v1533 = vadd.f32 0.0, %v1532
        %v1534 = vpop.f32.mrb[0].mxu0
        %v1535 = vpop.f32.mrb[0].mxu0
        %v1536 = vadd.f32 0.0, %v1535
        %v1537 = vpop.f32.mrb[0].mxu0
        %1538 = vdwg.mxu0
        %v1539 = vrcp.pop %v1337
        %v1540 = vrcp.pop %v1340
        %v1541 = vrcp.pop %v1343
        %v1542 = vrcp.pop %v1346
        %v1543 = vrcp.pop %v1349
        %v1544 = vrcp.pop %v1352
        %v1545 = vrcp.pop %v1355
        %v1546 = vrcp.pop %v1358
        %v1547 = vmul.f32 %v1401, %v1539
        %v1548 = vmul.f32 %v1404, %v1540
        %v1549 = vmul.f32 %v1445, %v1541
        %v1550 = vmul.f32 %v1448, %v1542
        %v1551 = vmul.f32 %v1489, %v1543
        %v1552 = vmul.f32 %v1492, %v1544
        %v1553 = vmul.f32 %v1533, %v1545
        %v1554 = vmul.f32 %v1536, %v1546
        %v1555 = vpack.c.bf16 %v1548, %v1547
        %v1556 = vpack.c.bf16 %v1550, %v1549
        %v1557 = vpack.c.bf16 %v1552, %v1551
        %v1558 = vpack.c.bf16 %v1554, %v1553
        %v1559 = vld [vmem:[#allocation11] sm:$0xf]
        %v1560 = vld [vmem:[#allocation11 + $0x4] sm:$0xf]
        %v1561 = vld [vmem:[#allocation11 + $0x8] sm:$0xf]
        %v1562 = vld [vmem:[#allocation11 + $0xc] sm:$0xf]
        %v1563 = vld [vmem:[#allocation11 + $0x10] sm:$0xf]
        %v1564 = vld [vmem:[#allocation11 + $0x14] sm:$0xf]
        %v1565 = vld [vmem:[#allocation11 + $0x18] sm:$0xf]
        %v1566 = vld [vmem:[#allocation11 + $0x1c] sm:$0xf]
        %v1567 = vld [vmem:[#allocation11 + $0x20] sm:$0xf]
        %v1568 = vld [vmem:[#allocation11 + $0x24] sm:$0xf]
        %v1569 = vld [vmem:[#allocation11 + $0x28] sm:$0xf]
        %v1570 = vld [vmem:[#allocation11 + $0x2c] sm:$0xf]
        %v1571 = vld [vmem:[#allocation11 + $0x30] sm:$0xf]
        %v1572 = vld [vmem:[#allocation11 + $0x34] sm:$0xf]
        %v1573 = vld [vmem:[#allocation11 + $0x38] sm:$0xf]
        %v1574 = vld [vmem:[#allocation11 + $0x3c] sm:$0xf]
        %v1579 = vunpack.c.l.b16 %v1559
        %v1580 = vunpack.c.l.b16 %v1560
        %v1581 = vunpack.c.l.b16 %v1561
        %v1582 = vunpack.c.l.b16 %v1562
        %v1583 = vpack.c.b16 %v1580, %v1579
        %v1584 = vpack.c.b16 %v1582, %v1581
        %v1588 = vsel %vm1097, %v1555, 0
        %1590 = vmatprep.subr.bf16.mxu0 0
        %1591 = vmatpush1.bf16.msra.mxu0 %v1583
        %1592 = vmatprep.subr.bf16.mxu0 0
        %1593 = vmatpush1.bf16.msra.mxu0 %v1584
        %1594 = vmatprep.subr.bf16.mxu0 0
        %1595 = vmatpush1.bf16.msra.mxu0 0
        %1596 = vmatprep.subr.bf16.mxu0 0
        %1597 = vmatpush1.bf16.msra.mxu0 0
        %1598 = vmatprep.subr.bf16.mxu0 0
        %1599 = vmatpush1.bf16.msra.mxu0 0
        %1600 = vmatprep.subr.bf16.mxu0 0
        %1601 = vmatpush1.bf16.msra.mxu0 0
        %1602 = vmatprep.subr.bf16.mxu0 0
        %1603 = vmatpush1.bf16.msra.mxu0 0
        %1604 = vmatprep.subr.bf16.mxu0 0
        %1605 = vmatpush1.bf16.msra.mxu0 0
        %1606 = vmatprep.subr.bf16.mxu0 0
        %1607 = vmatpush1.bf16.msra.mxu0 0
        %1608 = vmatprep.subr.bf16.mxu0 0
        %1609 = vmatpush1.bf16.msra.mxu0 0
        %1610 = vmatprep.subr.bf16.mxu0 0
        %1611 = vmatpush1.bf16.msra.mxu0 0
        %1612 = vmatprep.subr.bf16.mxu0 0
        %1613 = vmatpush1.bf16.msra.mxu0 0
        %1614 = vmatprep.subr.bf16.mxu0 0
        %1615 = vmatpush1.bf16.msra.mxu0 0
        %1616 = vmatprep.subr.bf16.mxu0 0
        %1617 = vmatpush1.bf16.msra.mxu0 0
        %1618 = vmatprep.subr.bf16.mxu0 0
        %1619 = vmatpush1.bf16.msra.mxu0 0
        %1620 = vmatprep.subr.bf16.mxu0 0
        %1621 = vmatpush1.bf16.msra.mxu0 0
        %1622 = vmatprep.mubr.bf16.mxu0 0
        %1623 = vmatmul.mubr.bf16.gmra.mrb[0].mxu0 %v1588
        %v1624 = vpop.f32.mrb[0].mxu0
        %v1625 = vadd.f32 0.0, %v1624
        %v1626 = vpop.f32.mrb[0].mxu0
        %v1627 = vpop.f32.mrb[0].mxu0
        %v1628 = vadd.f32 0.0, %v1627
        %v1629 = vpop.f32.mrb[0].mxu0
        %1630 = vdwg.mxu0
        %v1635 = vunpack.c.l.b16 %v1563
        %v1636 = vunpack.c.l.b16 %v1564
        %v1637 = vunpack.c.l.b16 %v1565
        %v1638 = vunpack.c.l.b16 %v1566
        %v1639 = vpack.c.b16 %v1636, %v1635
        %v1640 = vpack.c.b16 %v1638, %v1637
        %v1644 = vsel %vm1097, %v1556, 0
        %1646 = vmatprep.subr.bf16.mxu0 0
        %1647 = vmatpush1.bf16.msra.mxu0 %v1639
        %1648 = vmatprep.subr.bf16.mxu0 0
        %1649 = vmatpush1.bf16.msra.mxu0 %v1640
        %1650 = vmatprep.subr.bf16.mxu0 0
        %1651 = vmatpush1.bf16.msra.mxu0 0
        %1652 = vmatprep.subr.bf16.mxu0 0
        %1653 = vmatpush1.bf16.msra.mxu0 0
        %1654 = vmatprep.subr.bf16.mxu0 0
        %1655 = vmatpush1.bf16.msra.mxu0 0
        %1656 = vmatprep.subr.bf16.mxu0 0
        %1657 = vmatpush1.bf16.msra.mxu0 0
        %1658 = vmatprep.subr.bf16.mxu0 0
        %1659 = vmatpush1.bf16.msra.mxu0 0
        %1660 = vmatprep.subr.bf16.mxu0 0
        %1661 = vmatpush1.bf16.msra.mxu0 0
        %1662 = vmatprep.subr.bf16.mxu0 0
        %1663 = vmatpush1.bf16.msra.mxu0 0
        %1664 = vmatprep.subr.bf16.mxu0 0
        %1665 = vmatpush1.bf16.msra.mxu0 0
        %1666 = vmatprep.subr.bf16.mxu0 0
        %1667 = vmatpush1.bf16.msra.mxu0 0
        %1668 = vmatprep.subr.bf16.mxu0 0
        %1669 = vmatpush1.bf16.msra.mxu0 0
        %1670 = vmatprep.subr.bf16.mxu0 0
        %1671 = vmatpush1.bf16.msra.mxu0 0
        %1672 = vmatprep.subr.bf16.mxu0 0
        %1673 = vmatpush1.bf16.msra.mxu0 0
        %1674 = vmatprep.subr.bf16.mxu0 0
        %1675 = vmatpush1.bf16.msra.mxu0 0
        %1676 = vmatprep.subr.bf16.mxu0 0
        %1677 = vmatpush1.bf16.msra.mxu0 0
        %1678 = vmatprep.mubr.bf16.mxu0 0
        %1679 = vmatmul.mubr.bf16.gmra.mrb[0].mxu0 %v1644
        %v1680 = vpop.f32.mrb[0].mxu0
        %v1681 = vadd.f32 0.0, %v1680
        %v1682 = vpop.f32.mrb[0].mxu0
        %v1683 = vpop.f32.mrb[0].mxu0
        %v1684 = vadd.f32 0.0, %v1683
        %v1685 = vpop.f32.mrb[0].mxu0
        %1686 = vdwg.mxu0
        %v1691 = vunpack.c.l.b16 %v1567
        %v1692 = vunpack.c.l.b16 %v1568
        %v1693 = vunpack.c.l.b16 %v1569
        %v1694 = vunpack.c.l.b16 %v1570
        %v1695 = vpack.c.b16 %v1692, %v1691
        %v1696 = vpack.c.b16 %v1694, %v1693
        %v1700 = vsel %vm1097, %v1557, 0
        %1702 = vmatprep.subr.bf16.mxu0 0
        %1703 = vmatpush1.bf16.msra.mxu0 %v1695
        %1704 = vmatprep.subr.bf16.mxu0 0
        %1705 = vmatpush1.bf16.msra.mxu0 %v1696
        %1706 = vmatprep.subr.bf16.mxu0 0
        %1707 = vmatpush1.bf16.msra.mxu0 0
        %1708 = vmatprep.subr.bf16.mxu0 0
        %1709 = vmatpush1.bf16.msra.mxu0 0
        %1710 = vmatprep.subr.bf16.mxu0 0
        %1711 = vmatpush1.bf16.msra.mxu0 0
        %1712 = vmatprep.subr.bf16.mxu0 0
        %1713 = vmatpush1.bf16.msra.mxu0 0
        %1714 = vmatprep.subr.bf16.mxu0 0
        %1715 = vmatpush1.bf16.msra.mxu0 0
        %1716 = vmatprep.subr.bf16.mxu0 0
        %1717 = vmatpush1.bf16.msra.mxu0 0
        %1718 = vmatprep.subr.bf16.mxu0 0
        %1719 = vmatpush1.bf16.msra.mxu0 0
        %1720 = vmatprep.subr.bf16.mxu0 0
        %1721 = vmatpush1.bf16.msra.mxu0 0
        %1722 = vmatprep.subr.bf16.mxu0 0
        %1723 = vmatpush1.bf16.msra.mxu0 0
        %1724 = vmatprep.subr.bf16.mxu0 0
        %1725 = vmatpush1.bf16.msra.mxu0 0
        %1726 = vmatprep.subr.bf16.mxu0 0
        %1727 = vmatpush1.bf16.msra.mxu0 0
        %1728 = vmatprep.subr.bf16.mxu0 0
        %1729 = vmatpush1.bf16.msra.mxu0 0
        %1730 = vmatprep.subr.bf16.mxu0 0
        %1731 = vmatpush1.bf16.msra.mxu0 0
        %1732 = vmatprep.subr.bf16.mxu0 0
        %1733 = vmatpush1.bf16.msra.mxu0 0
        %1734 = vmatprep.mubr.bf16.mxu0 0
        %1735 = vmatmul.mubr.bf16.gmra.mrb[0].mxu0 %v1700
        %v1736 = vpop.f32.mrb[0].mxu0
        %v1737 = vadd.f32 0.0, %v1736
        %v1738 = vpop.f32.mrb[0].mxu0
        %v1739 = vpop.f32.mrb[0].mxu0
        %v1740 = vadd.f32 0.0, %v1739
        %v1741 = vpop.f32.mrb[0].mxu0
        %1742 = vdwg.mxu0
        %v1747 = vunpack.c.l.b16 %v1571
        %v1748 = vunpack.c.l.b16 %v1572
        %v1749 = vunpack.c.l.b16 %v1573
        %v1750 = vunpack.c.l.b16 %v1574
        %v1751 = vpack.c.b16 %v1748, %v1747
        %v1752 = vpack.c.b16 %v1750, %v1749
        %v1756 = vsel %vm1097, %v1558, 0
        %1758 = vmatprep.subr.bf16.mxu0 0
        %1759 = vmatpush1.bf16.msra.mxu0 %v1751
        %1760 = vmatprep.subr.bf16.mxu0 0
        %1761 = vmatpush1.bf16.msra.mxu0 %v1752
        %1762 = vmatprep.subr.bf16.mxu0 0
        %1763 = vmatpush1.bf16.msra.mxu0 0
        %1764 = vmatprep.subr.bf16.mxu0 0
        %1765 = vmatpush1.bf16.msra.mxu0 0
        %1766 = vmatprep.subr.bf16.mxu0 0
        %1767 = vmatpush1.bf16.msra.mxu0 0
        %1768 = vmatprep.subr.bf16.mxu0 0
        %1769 = vmatpush1.bf16.msra.mxu0 0
        %1770 = vmatprep.subr.bf16.mxu0 0
        %1771 = vmatpush1.bf16.msra.mxu0 0
        %1772 = vmatprep.subr.bf16.mxu0 0
        %1773 = vmatpush1.bf16.msra.mxu0 0
        %1774 = vmatprep.subr.bf16.mxu0 0
        %1775 = vmatpush1.bf16.msra.mxu0 0
        %1776 = vmatprep.subr.bf16.mxu0 0
        %1777 = vmatpush1.bf16.msra.mxu0 0
        %1778 = vmatprep.subr.bf16.mxu0 0
        %1779 = vmatpush1.bf16.msra.mxu0 0
        %1780 = vmatprep.subr.bf16.mxu0 0
        %1781 = vmatpush1.bf16.msra.mxu0 0
        %1782 = vmatprep.subr.bf16.mxu0 0
        %1783 = vmatpush1.bf16.msra.mxu0 0
        %1784 = vmatprep.subr.bf16.mxu0 0
        %1785 = vmatpush1.bf16.msra.mxu0 0
        %1786 = vmatprep.subr.bf16.mxu0 0
        %1787 = vmatpush1.bf16.msra.mxu0 0
        %1788 = vmatprep.subr.bf16.mxu0 0
        %1789 = vmatpush1.bf16.msra.mxu0 0
        %1790 = vmatprep.mubr.bf16.mxu0 0
        %1791 = vmatmul.mubr.bf16.gmra.mrb[0].mxu0 %v1756
        %v1792 = vpop.f32.mrb[0].mxu0
        %v1793 = vadd.f32 0.0, %v1792
        %v1794 = vpop.f32.mrb[0].mxu0
        %v1795 = vpop.f32.mrb[0].mxu0
        %v1796 = vadd.f32 0.0, %v1795
        %v1797 = vpop.f32.mrb[0].mxu0
        %1798 = vdwg.mxu0
        %v1799 = vadd.f32 %v1625, %v1681
        %v1800 = vadd.f32 %v1799, %v1737
        %v1801 = vadd.f32 %v1800, %v1793
        %v1802 = vadd.f32 %v1628, %v1684
        %v1803 = vadd.f32 %v1802, %v1740
        %v1804 = vadd.f32 %v1803, %v1796
        %v1805 = vld [vmem:[%s11] sm:$0x1]
        %v1807 = vlaneseq
        %v1808 = vshrl.u32 %v1807, 7
        %v1809 = vsub.s32 0, %v1808
        %v1810 = vrot.slane %v1805, %v1809
        %v1812 = vadd.f32 %v1801, %v1810
        %v1813 = vadd.f32 %v1804, %v1810
        %v1814 = vadd.f32 %v1812, %v645
        %v1815 = vadd.f32 %v1813, %v646
        %1816 = vadd.xlane.f32.xlu0 %v1814
        %v1817 = vpop.xlane.xlu0 %1816
        %1818 = vadd.xlane.f32.xlu0 %v1815
        %v1819 = vpop.xlane.xlu0 %1818
        %v1820 = vmul.f32 %v1817, %v651
        %v1821 = vmul.f32 %v1819, %v651
        %v1822 = vsub.f32 %v1814, %v1820
        %v1823 = vsub.f32 %v1815, %v1821
        %v1824 = vmul.f32 %v1822, %v1822
        %v1825 = vmul.f32 %v1823, %v1823
        %1826 = vadd.xlane.f32.xlu0 %v1824
        %v1827 = vpop.xlane.xlu0 %1826
        %1828 = vadd.xlane.f32.xlu0 %v1825
        %v1829 = vpop.xlane.xlu0 %1828
        %v1830 = vmul.f32 %v1827, %v651
        %v1831 = vmul.f32 %v1829, %v651
        %v1832 = vadd.f32 %v1830, 1e-05
        %v1833 = vadd.f32 %v1831, 1e-05
        %v1834 = vrsqrt.pop %v1832
        %v1835 = vrsqrt.pop %v1833
        %v1836 = vmul.f32 %v1822, %v1834
        %v1837 = vmul.f32 %v1823, %v1835
        %v1838 = vmul.f32 %v1836, %v674
        %v1839 = vmul.f32 %v1837, %v674
        %v1840 = vadd.f32 %v1838, %v682
        %v1841 = vadd.f32 %v1839, %v682
        %v1842 = vpack.c.bf16 %v1841, %v1840
        %v1843 = vld [vmem:[#allocation13] sm:$0xff]
        %v1844 = vld [vmem:[#allocation13 + $0x8] sm:$0xff]
        %v1845 = vld [vmem:[#allocation13 + $0x10] sm:$0xff]
        %v1846 = vld [vmem:[#allocation13 + $0x18] sm:$0xff]
        %v1847 = vld [vmem:[#allocation13 + $0x20] sm:$0xff]
        %v1848 = vld [vmem:[#allocation13 + $0x28] sm:$0xff]
        %v1849 = vld [vmem:[#allocation13 + $0x30] sm:$0xff]
        %v1850 = vld [vmem:[#allocation13 + $0x38] sm:$0xff]
        %v1851 = vld [vmem:[#allocation13 + $0x40] sm:$0xff]
        %v1852 = vld [vmem:[#allocation13 + $0x48] sm:$0xff]
        %v1853 = vld [vmem:[#allocation13 + $0x50] sm:$0xff]
        %v1854 = vld [vmem:[#allocation13 + $0x58] sm:$0xff]
        %v1855 = vld [vmem:[#allocation13 + $0x60] sm:$0xff]
        %v1856 = vld [vmem:[#allocation13 + $0x68] sm:$0xff]
        %v1857 = vld [vmem:[#allocation13 + $0x70] sm:$0xff]
        %v1858 = vld [vmem:[#allocation13 + $0x78] sm:$0xff]
        %v1859 = vld [vmem:[%s13] sm:$0x3]
        %v1861 = vlaneseq
        %v1862 = vshrl.u32 %v1861, 7
        %v1863 = vsub.s32 0, %v1862
        %v1864 = vrot.slane %v1859, %v1863
        %v1865 = vlaneseq
        %v1866 = vshrl.u32 %v1865, 7
        %v1867 = vsub.s32 1, %v1866
        %v1868 = vrot.slane %v1859, %v1867
        %v1887 = vunpack.c.l.b16 %v1843
        %v1888 = vunpack.c.h.b16 %v1843
        %v1889 = vunpack.c.l.b16 %v1844
        %v1890 = vunpack.c.h.b16 %v1844
        %v1891 = vunpack.c.l.b16 %v1845
        %v1892 = vunpack.c.h.b16 %v1845
        %v1893 = vunpack.c.l.b16 %v1846
        %v1894 = vunpack.c.h.b16 %v1846
        %v1895 = vunpack.c.l.b16 %v1847
        %v1896 = vunpack.c.h.b16 %v1847
        %v1897 = vunpack.c.l.b16 %v1848
        %v1898 = vunpack.c.h.b16 %v1848
        %v1899 = vunpack.c.l.b16 %v1849
        %v1900 = vunpack.c.h.b16 %v1849
        %v1901 = vunpack.c.l.b16 %v1850
        %v1902 = vunpack.c.h.b16 %v1850
        %v1903 = vunpack.c.l.b16 %v1851
        %v1904 = vunpack.c.h.b16 %v1851
        %v1905 = vunpack.c.l.b16 %v1852
        %v1906 = vunpack.c.h.b16 %v1852
        %v1907 = vunpack.c.l.b16 %v1853
        %v1908 = vunpack.c.h.b16 %v1853
        %v1909 = vunpack.c.l.b16 %v1854
        %v1910 = vunpack.c.h.b16 %v1854
        %v1911 = vunpack.c.l.b16 %v1855
        %v1912 = vunpack.c.h.b16 %v1855
        %v1913 = vunpack.c.l.b16 %v1856
        %v1914 = vunpack.c.h.b16 %v1856
        %v1915 = vunpack.c.l.b16 %v1857
        %v1916 = vunpack.c.h.b16 %v1857
        %v1917 = vunpack.c.l.b16 %v1858
        %v1918 = vunpack.c.h.b16 %v1858
        %v1919 = vpack.c.b16 %v1889, %v1887
        %v1920 = vpack.c.b16 %v1890, %v1888
        %v1921 = vpack.c.b16 %v1893, %v1891
        %v1922 = vpack.c.b16 %v1894, %v1892
        %v1923 = vpack.c.b16 %v1897, %v1895
        %v1924 = vpack.c.b16 %v1898, %v1896
        %v1925 = vpack.c.b16 %v1901, %v1899
        %v1926 = vpack.c.b16 %v1902, %v1900
        %v1927 = vpack.c.b16 %v1905, %v1903
        %v1928 = vpack.c.b16 %v1906, %v1904
        %v1929 = vpack.c.b16 %v1909, %v1907
        %v1930 = vpack.c.b16 %v1910, %v1908
        %v1931 = vpack.c.b16 %v1913, %v1911
        %v1932 = vpack.c.b16 %v1914, %v1912
        %v1933 = vpack.c.b16 %v1917, %v1915
        %v1934 = vpack.c.b16 %v1918, %v1916
        %1951 = vmatprep.subr.bf16.mxu0 %v1920
        %1952 = vmatpush1.bf16.msra.mxu0 %v1919
        %1953 = vmatprep.subr.bf16.mxu0 %v1922
        %1954 = vmatpush1.bf16.msra.mxu0 %v1921
        %1955 = vmatprep.subr.bf16.mxu0 %v1924
        %1956 = vmatpush1.bf16.msra.mxu0 %v1923
        %1957 = vmatprep.subr.bf16.mxu0 %v1926
        %1958 = vmatpush1.bf16.msra.mxu0 %v1925
        %1959 = vmatprep.subr.bf16.mxu0 %v1928
        %1960 = vmatpush1.bf16.msra.mxu0 %v1927
        %1961 = vmatprep.subr.bf16.mxu0 %v1930
        %1962 = vmatpush1.bf16.msra.mxu0 %v1929
        %1963 = vmatprep.subr.bf16.mxu0 %v1932
        %1964 = vmatpush1.bf16.msra.mxu0 %v1931
        %1965 = vmatprep.subr.bf16.mxu0 %v1934
        %1966 = vmatpush1.bf16.msra.mxu0 %v1933
        %1967 = vmatprep.subr.bf16.mxu0 0
        %1968 = vmatpush1.bf16.msra.mxu0 0
        %1969 = vmatprep.subr.bf16.mxu0 0
        %1970 = vmatpush1.bf16.msra.mxu0 0
        %1971 = vmatprep.subr.bf16.mxu0 0
        %1972 = vmatpush1.bf16.msra.mxu0 0
        %1973 = vmatprep.subr.bf16.mxu0 0
        %1974 = vmatpush1.bf16.msra.mxu0 0
        %1975 = vmatprep.subr.bf16.mxu0 0
        %1976 = vmatpush1.bf16.msra.mxu0 0
        %1977 = vmatprep.subr.bf16.mxu0 0
        %1978 = vmatpush1.bf16.msra.mxu0 0
        %1979 = vmatprep.subr.bf16.mxu0 0
        %1980 = vmatpush1.bf16.msra.mxu0 0
        %1981 = vmatprep.subr.bf16.mxu0 0
        %1982 = vmatpush1.bf16.msra.mxu0 0
        %1983 = vmatprep.mubr.bf16.mxu0 0
        %1984 = vmatmul.mubr.bf16.gmra.mrb[0].mxu0 %v1842
        %v1985 = vpop.f32.mrb[0].mxu0
        %v1986 = vadd.f32 %v1864, %v1985
        %v1987 = vpop.f32.mrb[0].mxu0
        %v1988 = vadd.f32 %v1868, %v1987
        %v1989 = vpop.f32.mrb[0].mxu0
        %v1990 = vadd.f32 %v1864, %v1989
        %v1991 = vpop.f32.mrb[0].mxu0
        %v1992 = vadd.f32 %v1868, %v1991
        %1993 = vdwg.mxu0
        %v1994 = vmax.f32 %v1986, 0.0
        %v1995 = vmax.f32 %v1988, 0.0
        %v1996 = vmax.f32 %v1990, 0.0
        %v1997 = vmax.f32 %v1992, 0.0
        %v1998 = vpack.c.bf16 %v1996, %v1994
        %v1999 = vpack.c.bf16 %v1997, %v1995
        %v2000 = vld [vmem:[#allocation14] sm:$0xf]
        %v2001 = vld [vmem:[#allocation14 + $0x4] sm:$0xf]
        %v2002 = vld [vmem:[#allocation14 + $0x8] sm:$0xf]
        %v2003 = vld [vmem:[#allocation14 + $0xc] sm:$0xf]
        %v2004 = vld [vmem:[#allocation14 + $0x10] sm:$0xf]
        %v2005 = vld [vmem:[#allocation14 + $0x14] sm:$0xf]
        %v2006 = vld [vmem:[#allocation14 + $0x18] sm:$0xf]
        %v2007 = vld [vmem:[#allocation14 + $0x1c] sm:$0xf]
        %v2008 = vld [vmem:[#allocation14 + $0x20] sm:$0xf]
        %v2009 = vld [vmem:[#allocation14 + $0x24] sm:$0xf]
        %v2010 = vld [vmem:[#allocation14 + $0x28] sm:$0xf]
        %v2011 = vld [vmem:[#allocation14 + $0x2c] sm:$0xf]
        %v2012 = vld [vmem:[#allocation14 + $0x30] sm:$0xf]
        %v2013 = vld [vmem:[#allocation14 + $0x34] sm:$0xf]
        %v2014 = vld [vmem:[#allocation14 + $0x38] sm:$0xf]
        %v2015 = vld [vmem:[#allocation14 + $0x3c] sm:$0xf]
        %v2016 = vld [vmem:[#allocation14 + $0x40] sm:$0xf]
        %v2017 = vld [vmem:[#allocation14 + $0x44] sm:$0xf]
        %v2018 = vld [vmem:[#allocation14 + $0x48] sm:$0xf]
        %v2019 = vld [vmem:[#allocation14 + $0x4c] sm:$0xf]
        %v2020 = vld [vmem:[#allocation14 + $0x50] sm:$0xf]
        %v2021 = vld [vmem:[#allocation14 + $0x54] sm:$0xf]
        %v2022 = vld [vmem:[#allocation14 + $0x58] sm:$0xf]
        %v2023 = vld [vmem:[#allocation14 + $0x5c] sm:$0xf]
        %v2024 = vld [vmem:[#allocation14 + $0x60] sm:$0xf]
        %v2025 = vld [vmem:[#allocation14 + $0x64] sm:$0xf]
        %v2026 = vld [vmem:[#allocation14 + $0x68] sm:$0xf]
        %v2027 = vld [vmem:[#allocation14 + $0x6c] sm:$0xf]
        %v2028 = vld [vmem:[#allocation14 + $0x70] sm:$0xf]
        %v2029 = vld [vmem:[#allocation14 + $0x74] sm:$0xf]
        %v2030 = vld [vmem:[#allocation14 + $0x78] sm:$0xf]
        %v2031 = vld [vmem:[#allocation14 + $0x7c] sm:$0xf]
        %v2032 = vld [vmem:[%s15] sm:$0x1]
        %v2034 = vlaneseq
        %v2035 = vshrl.u32 %v2034, 7
        %v2036 = vsub.s32 0, %v2035
        %v2037 = vrot.slane %v2032, %v2036
        %v2071 = vunpack.c.l.b16 %v2000
        %v2072 = vunpack.c.l.b16 %v2001
        %v2073 = vunpack.c.l.b16 %v2002
        %v2074 = vunpack.c.l.b16 %v2003
        %v2075 = vunpack.c.l.b16 %v2004
        %v2076 = vunpack.c.l.b16 %v2005
        %v2077 = vunpack.c.l.b16 %v2006
        %v2078 = vunpack.c.l.b16 %v2007
        %v2079 = vunpack.c.l.b16 %v2008
        %v2080 = vunpack.c.l.b16 %v2009
        %v2081 = vunpack.c.l.b16 %v2010
        %v2082 = vunpack.c.l.b16 %v2011
        %v2083 = vunpack.c.l.b16 %v2012
        %v2084 = vunpack.c.l.b16 %v2013
        %v2085 = vunpack.c.l.b16 %v2014
        %v2086 = vunpack.c.l.b16 %v2015
        %v2087 = vunpack.c.l.b16 %v2016
        %v2088 = vunpack.c.l.b16 %v2017
        %v2089 = vunpack.c.l.b16 %v2018
        %v2090 = vunpack.c.l.b16 %v2019
        %v2091 = vunpack.c.l.b16 %v2020
        %v2092 = vunpack.c.l.b16 %v2021
        %v2093 = vunpack.c.l.b16 %v2022
        %v2094 = vunpack.c.l.b16 %v2023
        %v2095 = vunpack.c.l.b16 %v2024
        %v2096 = vunpack.c.l.b16 %v2025
        %v2097 = vunpack.c.l.b16 %v2026
        %v2098 = vunpack.c.l.b16 %v2027
        %v2099 = vunpack.c.l.b16 %v2028
        %v2100 = vunpack.c.l.b16 %v2029
        %v2101 = vunpack.c.l.b16 %v2030
        %v2102 = vunpack.c.l.b16 %v2031
        %v2103 = vpack.c.b16 %v2072, %v2071
        %v2104 = vpack.c.b16 %v2074, %v2073
        %v2105 = vpack.c.b16 %v2076, %v2075
        %v2106 = vpack.c.b16 %v2078, %v2077
        %v2107 = vpack.c.b16 %v2080, %v2079
        %v2108 = vpack.c.b16 %v2082, %v2081
        %v2109 = vpack.c.b16 %v2084, %v2083
        %v2110 = vpack.c.b16 %v2086, %v2085
        %v2111 = vpack.c.b16 %v2088, %v2087
        %v2112 = vpack.c.b16 %v2090, %v2089
        %v2113 = vpack.c.b16 %v2092, %v2091
        %v2114 = vpack.c.b16 %v2094, %v2093
        %v2115 = vpack.c.b16 %v2096, %v2095
        %v2116 = vpack.c.b16 %v2098, %v2097
        %v2117 = vpack.c.b16 %v2100, %v2099
        %v2118 = vpack.c.b16 %v2102, %v2101
        %2135 = vmatprep.subr.bf16.mxu0 0
        %2136 = vmatpush1.bf16.msra.mxu0 %v2103
        %2137 = vmatprep.subr.bf16.mxu0 0
        %2138 = vmatpush1.bf16.msra.mxu0 %v2104
        %2139 = vmatprep.subr.bf16.mxu0 0
        %2140 = vmatpush1.bf16.msra.mxu0 %v2105
        %2141 = vmatprep.subr.bf16.mxu0 0
        %2142 = vmatpush1.bf16.msra.mxu0 %v2106
        %2143 = vmatprep.subr.bf16.mxu0 0
        %2144 = vmatpush1.bf16.msra.mxu0 %v2107
        %2145 = vmatprep.subr.bf16.mxu0 0
        %2146 = vmatpush1.bf16.msra.mxu0 %v2108
        %2147 = vmatprep.subr.bf16.mxu0 0
        %2148 = vmatpush1.bf16.msra.mxu0 %v2109
        %2149 = vmatprep.subr.bf16.mxu0 0
        %2150 = vmatpush1.bf16.msra.mxu0 %v2110
        %2151 = vmatprep.subr.bf16.mxu0 0
        %2152 = vmatpush1.bf16.msra.mxu0 %v2111
        %2153 = vmatprep.subr.bf16.mxu0 0
        %2154 = vmatpush1.bf16.msra.mxu0 %v2112
        %2155 = vmatprep.subr.bf16.mxu0 0
        %2156 = vmatpush1.bf16.msra.mxu0 %v2113
        %2157 = vmatprep.subr.bf16.mxu0 0
        %2158 = vmatpush1.bf16.msra.mxu0 %v2114
        %2159 = vmatprep.subr.bf16.mxu0 0
        %2160 = vmatpush1.bf16.msra.mxu0 %v2115
        %2161 = vmatprep.subr.bf16.mxu0 0
        %2162 = vmatpush1.bf16.msra.mxu0 %v2116
        %2163 = vmatprep.subr.bf16.mxu0 0
        %2164 = vmatpush1.bf16.msra.mxu0 %v2117
        %2165 = vmatprep.subr.bf16.mxu0 0
        %2166 = vmatpush1.bf16.msra.mxu0 %v2118
        %2167 = vmatprep.mubr.bf16.mxu0 %v1999
        %2168 = vmatmul.mubr.bf16.gmra.mrb[0].mxu0 %v1998
        %v2169 = vpop.f32.mrb[0].mxu0
        %v2170 = vadd.f32 %v2037, %v2169
        %v2171 = vpop.f32.mrb[0].mxu0
        %v2172 = vpop.f32.mrb[0].mxu0
        %v2173 = vadd.f32 %v2037, %v2172
        %v2174 = vpop.f32.mrb[0].mxu0
        %2175 = vdwg.mxu0
        %v2176 = vadd.f32 %v2170, %v1814
        %v2177 = vadd.f32 %v2173, %v1815
        %2178 = vst [vmem:[%s641] sm:$0xff] %v2176
        %2179 = vst [vmem:[%s641 + $0x8] sm:$0xff] %v2177
        %s2180 = sand.u32 %s386, 1
        %s2181 = scalar_lea.sflag [#allocation4], %s2180
        %s2182 = sand.u32 %s386, 1
        %s2183 = smul.addr %s2182, 16
        %s2184 = scalar_lea.vmem [#allocation16], %s2183
        // Predicated region
        $region117: #{tpu_custom_call.1} parent=83 // pred_check
          %p2185 = pneg %p396
        $region118: #{tpu_custom_call.1} parent=83 // pred_check_branch
          %2187 = sbr.rel (%p2185) target = $region120
        $region119: #{tpu_custom_call.1} parent=83 // pred_region
          %s2189 = ssub.s32 256, 256
          %2190 = vsyncadd %s2181, %s2189
          %s2191 = smul.addr %s37, 2
          %s2192 = smul.addr %s2191, 128
          %s2193 = scalar_lea.hbm %s16, %s2192
          %s2194 = sshll.u32 %s2184, 4
          %s2195 = int_to_ptr.vmem [resolvable:$true] %s2194
          %2200 = dma.vmem_to_hbm [thread:$0]  %s2195, 256, %s2193, %s2181, 128, 128, 8
        $region120: #{tpu_custom_call.1} parent=83 // pred_fallthru
          _
      $region84: #{tpu_custom_call.1} parent=5 // pred_fallthru
        _
      %p2201 = scmp.le.s32.totalorder 2, %s32
      // Predicated region
      $region121: #{tpu_custom_call.1} parent=5 // pred_check
        %p2202 = pneg %p2201
      $region122: #{tpu_custom_call.1} parent=5 // pred_check_branch
        %2204 = sbr.rel (%p2202) target = $region124
      $region123: #{tpu_custom_call.1} parent=5 // pred_region
        %s2205 = ssub.s32 %s32, 2
        // Predicated region
        $region125: #{tpu_custom_call.1} parent=123 // pred_check
          %p2206 = pneg %p402
        $region126: #{tpu_custom_call.1} parent=123 // pred_check_branch
          %2208 = sbr.rel (%p2206) target = $region128
        $region127: #{tpu_custom_call.1} parent=123 // pred_region
          %s2209 = sand.u32 %s387, 1
          %s2210 = scalar_lea.sflag [#allocation4], %s2209
          %s2211 = sand.u32 %s387, 1
          %s2212 = smul.addr %s2211, 16
          %s2213 = scalar_lea.vmem [#allocation16], %s2212
          %2214 = dma.done %s2210, 256
        $region128: #{tpu_custom_call.1} parent=123 // pred_fallthru
          _
      $region124: #{tpu_custom_call.1} parent=5 // pred_fallthru
        _
    $region6: #{tpu_custom_call.1} parent=1 // loop_footer
      %s36 = sadd.s32 1, %s32
    $region7: #{tpu_custom_call.1} parent=1 // loop_footer_branch
      %31 = sbr.rel target = $region3
    $region8: #{tpu_custom_call.1} parent=1 // loop_exit
      _
    %2215 = vsyncpa [#allocation3], 1
    %s2216 = scalar_lea.sflag [#allocation3], 1
    %2217 = vsyncpa %s2216, 1
    %2218 = vsyncpa [#allocation6], 1
    %2219 = vsyncpa [#allocation9], 1
    %2220 = vsyncpa [#allocation12], 1
    %2221 = vsyncpa [#allocation15], 1
    %2222 = vsyncpa [#allocation4], 1
    %s2223 = scalar_lea.sflag [#allocation4], 1
    %2224 = vsyncpa %s2223, 1

</llo_original>
